<compile_context>
chip_gen: v7x
topology: tpu7x:2x2x1
jax: 0.10.0
libtpu: 0.0.40
codegen_flags: <defaults>
</compile_context>

<pallas_src>
import functools

import jax
import jax.numpy as jnp
from jax import lax
from jax.experimental import pallas as pl
from jax.experimental.pallas import tpu as pltpu

# ----------------------------- configuration --------------------------------
X_BOUND = [-8.0, 8.0, 1.0]
Y_BOUND = [-8.0, 8.0, 1.0]
Z_BOUND = [-2.0, 2.0, 4.0]
D_BOUND = [1.0, 5.0, 1.0]          # -> depth channels D = 4
FINAL_DIM = (32, 32)
DOWNSAMPLE = 4                      # -> fH = fW = 8
OUT_CHANNELS = 8
BN_EPS = 1e-5


# ----------------------------- frustum / geometry (glue) --------------------
def create_frustum():
    ogfH, ogfW = FINAL_DIM
    fH, fW = ogfH // DOWNSAMPLE, ogfW // DOWNSAMPLE
    d = jnp.arange(*D_BOUND, dtype=jnp.float32).reshape(-1, 1, 1)
    D = d.shape[0]
    d = jnp.broadcast_to(d, (D, fH, fW))
    x = jnp.broadcast_to(
        jnp.linspace(0.0, ogfW - 1, fW, dtype=jnp.float32).reshape(1, 1, fW), (D, fH, fW))
    y = jnp.broadcast_to(
        jnp.linspace(0.0, ogfH - 1, fH, dtype=jnp.float32).reshape(1, fH, 1), (D, fH, fW))
    pad = jnp.ones_like(d)
    return jnp.stack([x, y, d, pad], axis=-1)  # (D, fH, fW, 4)


def get_geometry(frustum, sensor2ego, intrin, ida, bda):
    """Camera frustum -> ego coords.  (B, N, D, fH, fW, 3)"""
    B, N = sensor2ego.shape[:2]
    pts = frustum[None, None, ..., None]                       # (1,1,D,fH,fW,4,1)
    ida_inv = jnp.linalg.inv(ida).reshape(B, N, 1, 1, 1, 4, 4)
    pts = ida_inv @ pts                                        # (B,N,D,fH,fW,4,1)
    pts = jnp.concatenate(
        [pts[..., :2, :] * pts[..., 2:3, :], pts[..., 2:, :]], axis=-2)
    combine = sensor2ego @ jnp.linalg.inv(intrin)
    pts = combine.reshape(B, N, 1, 1, 1, 4, 4) @ pts
    bda_e = jnp.broadcast_to(bda[:, None], (B, N, 4, 4)).reshape(B, N, 1, 1, 1, 4, 4)
    pts = (bda_e @ pts)[..., 0]
    return pts[..., :3]


# ------------- fused kernel: lift + DepthAggregation + voxel pooling --------
# Activation layout inside the kernel: (C, NP) with NP = D*H*W and
#   p = d*(H*W) + h*W + w      (h = independent conv "sample" index, conv spatial = (w, d))
# This matches the point ordering of geom_xyz, so the in-kernel one-hot pooling can
# consume the DA output directly and write a lane-dense (C, V) per-camera BEV partial.
def _fused_bev_kernel(img_ref, dep_ref, vid_ref, mask_ref, w_ref, shift_ref, o_ref,
                      *, C, D, H, W, V):
    HW = H * W
    NP = D * HW

    # lift: depth x feature outer product (single lane-dense broadcast multiply)
    x0 = img_ref[0] * dep_ref[0]                          # (C, NP) f32

    def conv_bn(x, li, relu):
        # im2col over the (w, d) conv plane via static lane rolls; the 3x3 zero-pad halo
        # is applied as ONE precomputed (9C, NP) mask multiply after the bf16 cast.
        slabs = []
        for k in range(9):
            kh, kw = divmod(k, 3)
            off = (kw - 1) * HW + (kh - 1)                # lane offset of tap (kh, kw)
            slabs.append(jnp.roll(x, -off, axis=1) if off != 0 else x)
        patches = jnp.concatenate(slabs, axis=0).astype(jnp.bfloat16) * mask_ref[...]
        y = jnp.dot(w_ref[li], patches,
                    preferred_element_type=jnp.float32)   # (C, NP) f32
        y = y + shift_ref[li]                             # BN shift / bias (scale folded)
        return jnp.maximum(y, 0.0) if relu else y

    x1 = conv_bn(x0, 0, True)          # reduce_conv: conv+BN+ReLU
    t = conv_bn(x1, 1, True)           # conv block, layer 1
    t = conv_bn(t, 2, True)            # conv block, layer 2
    y = conv_bn(t + x1, 3, False)      # residual, then out_conv (bias only, no ReLU)

    # fused voxel pooling: scatter-add into the BEV plane as a one-hot MXU matmul.
    vid = vid_ref[0]                                      # (NP, 1) int32, -1 = invalid
    lane = lax.broadcasted_iota(jnp.int32, (NP, V), 1)
    onehot = (lane == vid).astype(jnp.bfloat16)           # (NP, V); 0/1 exact in bf16
    o_ref[0] = jnp.dot(y.astype(jnp.bfloat16), onehot,
                       preferred_element_type=jnp.float32)  # (C, V) per-camera partial


def fused_bev_generation(img_feats, depth_feats, vid, params, ny, nx):
    """(BN,C,H,W),(BN,D,H,W),(BN,NP,1) -> (BN, C, ny*nx) per-camera BEV partials."""
    BN, C, H, W = img_feats.shape
    D = depth_feats.shape[1]
    HW, NP, V = H * W, D * H * W, ny * nx

    # lane-dense lift inputs: img tiled across D along the lane axis, depth as one row.
    img_tiled = jnp.tile(img_feats.reshape(BN, C, HW), (1, 1, D))      # (BN, C, NP)
    dep_row = depth_feats.reshape(BN, 1, NP)                           # (BN, 1, NP)

    # fold BN scale into conv weights (host side), im2col layout (Cout, 9*Cin) where
    # column index = (kh*3 + kw)*Cin + cin.
    def im2col(w, scale):
        w = w * scale[:, None, None, None]
        return w.transpose(0, 2, 3, 1).reshape(w.shape[0], -1)

    w_stack = jnp.stack([im2col(params['w_r'], params['scale_r']),
                         im2col(params['w_1'], params['scale_1']),
                         im2col(params['w_2'], params['scale_2']),
                         im2col(params['w_o'], params['scale_o'])]
                        ).astype(jnp.bfloat16)                         # (4, C, 9*C)
    shift_stack = jnp.stack([params['shift_r'], params['shift_1'],
                             params['shift_2'], params['shift_o']]
                            ).reshape(4, C, 1).astype(jnp.float32)     # (4, C, 1)

    # static 3x3 halo validity masks, pre-broadcast to the im2col row layout (9C, NP).
    p = jnp.arange(NP)
    w_idx, d_idx = p % W, p // HW
    rows = []
    for k in range(9):
        kh, kw = divmod(k, 3)
        dw, dd = kh - 1, kw - 1
        rows.append((w_idx + dw >= 0) & (w_idx + dw < W)
                    & (d_idx + dd >= 0) & (d_idx + dd < D))
    mask_full = jnp.repeat(jnp.stack(rows, axis=0), C, axis=0).astype(jnp.bfloat16)

    kern = functools.partial(_fused_bev_kernel, C=C, D=D, H=H, W=W, V=V)
    return pl.pallas_call(
        kern,
        out_shape=jax.ShapeDtypeStruct((BN, C, V), jnp.float32),
        grid=(BN,),
        in_specs=[pl.BlockSpec((1, C, NP), lambda n: (n, 0, 0)),       # img (tiled)
                  pl.BlockSpec((1, 1, NP), lambda n: (n, 0, 0)),       # depth row
                  pl.BlockSpec((1, NP, 1), lambda n: (n, 0, 0)),       # voxel ids
                  pl.BlockSpec((9 * C, NP), lambda n: (0, 0)),         # halo masks
                  pl.BlockSpec((4, C, 9 * C), lambda n: (0, 0, 0)),    # folded weights
                  pl.BlockSpec((4, C, 1), lambda n: (0, 0, 0))],       # shifts / biases
        out_specs=pl.BlockSpec((1, C, V), lambda n: (n, 0, 0)),
        compiler_params=pltpu.CompilerParams(dimension_semantics=("parallel",)),
    )(img_tiled, dep_row, vid, mask_full, w_stack, shift_stack)


# ----------------------------- full forward ---------------------------------
def img_bev_generation_forward(img_feats, depth_feats,
                               sensor2ego, intrin, ida, bda, params):
    B, Ncams = sensor2ego.shape[:2]
    BN, C, H, W = img_feats.shape
    D = depth_feats.shape[1]
    assert BN == B * Ncams

    # --- geometry (glue, plain JAX) ---
    frustum = create_frustum()
    geom = get_geometry(frustum, sensor2ego, intrin, ida, bda)      # (B,N,D,H,W,3)
    voxel_size = jnp.array([X_BOUND[2], Y_BOUND[2], Z_BOUND[2]], jnp.float32)
    voxel_coord = jnp.array([X_BOUND[0] + X_BOUND[2] / 2.0,
                             Y_BOUND[0] + Y_BOUND[2] / 2.0,
                             Z_BOUND[0] + Z_BOUND[2] / 2.0], jnp.float32)
    nx, ny, nz = (int((b[1] - b[0]) / b[2]) for b in (X_BOUND, Y_BOUND, Z_BOUND))
    # .astype(int32) truncates toward zero, matching torch .int() in the reference.
    geom_xyz = ((geom - (voxel_coord - voxel_size / 2.0)) / voxel_size).astype(jnp.int32)
    gx, gy, gz = geom_xyz[..., 0], geom_xyz[..., 1], geom_xyz[..., 2]
    valid = ((gx >= 0) & (gx < nx) & (gy >= 0) & (gy < ny) & (gz >= 0) & (gz < nz))
    # z collapses into the BEV plane (nz == 1 here), matching voxel_pooling_train.
    vid = jnp.where(valid, gy * nx + gx, -1).astype(jnp.int32)       # (B,N,D,H,W)
    vid = vid.reshape(B * Ncams, D * H * W, 1)

    # --- fused lift + DepthAggregation + voxel pooling (single Pallas kernel) ---
    partials = fused_bev_generation(img_feats, depth_feats, vid, params, ny, nx)

    # --- per-batch sum of per-camera partials (tiny, XLA) ---
    bev = partials.reshape(B, Ncams, C, ny * nx).sum(axis=1).reshape(B, C, ny, nx)
    return bev


# ----------------------------- parameter / input setup ----------------------
def make_params(key, C):
    ks = jax.random.split(key, 12)

    def conv_w(k):
        return 0.1 * jax.random.normal(k, (C, C, 3, 3), jnp.float32)

    def bn(kg, kb):
        gamma = 1.0 + 0.1 * jax.random.normal(kg, (C,), jnp.float32)
        beta = 0.1 * jax.random.normal(kb, (C,), jnp.float32)
        mean = jnp.zeros((C,), jnp.float32)      # eval-mode running stats
        var = jnp.ones((C,), jnp.float32)
        scale = gamma / jnp.sqrt(var + BN_EPS)
        shift = beta - mean * scale
        return scale, shift

    params = {'w_r': conv_w(ks[0]), 'w_1': conv_w(ks[1]),
              'w_2': conv_w(ks[2]), 'w_o': conv_w(ks[3])}
    params['scale_r'], params['shift_r'] = bn(ks[4], ks[5])
    params['scale_1'], params['shift_1'] = bn(ks[6], ks[7])
    params['scale_2'], params['shift_2'] = bn(ks[8], ks[9])
    params['scale_o'] = jnp.ones((C,), jnp.float32)                  # out_conv: bias only
    params['shift_o'] = 0.1 * jax.random.normal(ks[10], (C,), jnp.float32)
    return params


if __name__ == "__main__":
    key = jax.random.PRNGKey(0)
    k_par, k_feat, k_dep = jax.random.split(key, 3)

    B, Ncams = 1, 2
    C = OUT_CHANNELS
    ogfH, ogfW = FINAL_DIM
    fH, fW = ogfH // DOWNSAMPLE, ogfW // DOWNSAMPLE                  # 8, 8
    D = int((D_BOUND[1] - D_BOUND[0]) / D_BOUND[2])                  # 4

    img_feats = jax.random.normal(k_feat, (B * Ncams, C, fH, fW), jnp.float32)
    depth_feats = jax.nn.softmax(
        jax.random.normal(k_dep, (B * Ncams, D, fH, fW), jnp.float32), axis=1)

    # deterministic camera parameters (camera -> ego: x_ego=z_cam, y_ego=-x_cam, z_ego=-y_cam)
    R = jnp.array([[0., 0., 1.], [-1., 0., 0.], [0., -1., 0.]], jnp.float32)
    s2e = jnp.eye(4, dtype=jnp.float32).at[:3, :3].set(R).at[:3, 3].set(
        jnp.array([0.5, 0.0, 1.0], jnp.float32))
    sensor2ego = jnp.broadcast_to(s2e, (B, Ncams, 4, 4))
    K = jnp.array([[20., 0., 16., 0.], [0., 20., 16., 0.],
                   [0., 0., 1., 0.], [0., 0., 0., 1.]], jnp.float32)
    intrin = jnp.broadcast_to(K, (B, Ncams, 4, 4))
    ida = jnp.broadcast_to(jnp.eye(4, dtype=jnp.float32), (B, Ncams, 4, 4))
    bda = jnp.broadcast_to(jnp.eye(4, dtype=jnp.float32), (B, 4, 4))

    params = make_params(k_par, C)

    bev = img_bev_generation_forward(img_feats, depth_feats,
                                     sensor2ego, intrin, ida, bda, params)
    jax.block_until_ready(bev)
    assert bev.shape == (B, C, 16, 16)
    print("KERNEL_OK")
</pallas_src>

<mosaic_0001>
module attributes {stable_mosaic.version = 11 : i64} {
  func.func @_fused_bev_kernel(%arg0: i32, %arg1: memref<1x8x256xf32, #tpu.memory_space<vmem>>, %arg2: memref<1x1x256xf32, #tpu.memory_space<vmem>>, %arg3: memref<1x256x1xi32, #tpu.memory_space<vmem>>, %arg4: memref<72x256xbf16, #tpu.memory_space<vmem>>, %arg5: memref<4x8x72xbf16, #tpu.memory_space<vmem>>, %arg6: memref<4x8x1xf32, #tpu.memory_space<vmem>>, %arg7: memref<1x8x256xf32, #tpu.memory_space<vmem>>) attributes {dimension_semantics = [#tpu.dimension_semantics<parallel>], iteration_bounds = array<i64: 2>, scalar_prefetch = 0 : i64, scratch_operands = 0 : i64, tpu.core_type = #tpu.core_type<tc>, window_params = [{transform_indices = @transform_0, window_bounds = array<i64: 1, 8, 256>}, {transform_indices = @transform_1, window_bounds = array<i64: 1, 1, 256>}, {transform_indices = @transform_2, window_bounds = array<i64: 1, 256, 1>}, {pipeline_mode = #tpu.pipeline_mode<synchronous>, transform_indices = @transform_3, window_bounds = array<i64: 72, 256>}, {pipeline_mode = #tpu.pipeline_mode<synchronous>, transform_indices = @transform_4, window_bounds = array<i64: 4, 8, 72>}, {pipeline_mode = #tpu.pipeline_mode<synchronous>, transform_indices = @transform_5, window_bounds = array<i64: 4, 8, 1>}, {transform_indices = @transform_6, window_bounds = array<i64: 1, 8, 256>}]} {
    %c0 = arith.constant 0 : index
    %c0_0 = arith.constant 0 : index
    %c0_1 = arith.constant 0 : index
    %0 = vector.load %arg1[%c0, %c0_0, %c0_1] : memref<1x8x256xf32, #tpu.memory_space<vmem>>, vector<1x8x256xf32>
    %1 = vector.shape_cast %0 : vector<1x8x256xf32> to vector<8x256xf32>
    %c0_2 = arith.constant 0 : index
    %c0_3 = arith.constant 0 : index
    %c0_4 = arith.constant 0 : index
    %2 = vector.load %arg2[%c0_2, %c0_3, %c0_4] : memref<1x1x256xf32, #tpu.memory_space<vmem>>, vector<1x1x256xf32>
    %3 = vector.shape_cast %2 : vector<1x1x256xf32> to vector<1x256xf32>
    %4 = vector.broadcast %3 : vector<1x256xf32> to vector<8x256xf32>
    %5 = arith.mulf %1, %4 : vector<8x256xf32>
    %6 = vector.extract_strided_slice %5 {offsets = [0, 191], sizes = [8, 65], strides = [1, 1]} : vector<8x256xf32> to vector<8x65xf32>
    %7 = vector.extract_strided_slice %5 {offsets = [0, 0], sizes = [8, 191], strides = [1, 1]} : vector<8x256xf32> to vector<8x191xf32>
    %8 = tpu.concatenate %6, %7 in 1 : vector<8x65xf32>, vector<8x191xf32> -> vector<8x256xf32>
    %9 = vector.extract_strided_slice %5 {offsets = [0, 255], sizes = [8, 1], strides = [1, 1]} : vector<8x256xf32> to vector<8x1xf32>
    %10 = vector.extract_strided_slice %5 {offsets = [0, 0], sizes = [8, 255], strides = [1, 1]} : vector<8x256xf32> to vector<8x255xf32>
    %11 = tpu.concatenate %9, %10 in 1 : vector<8x1xf32>, vector<8x255xf32> -> vector<8x256xf32>
    %12 = vector.extract_strided_slice %5 {offsets = [0, 63], sizes = [8, 193], strides = [1, 1]} : vector<8x256xf32> to vector<8x193xf32>
    %13 = vector.extract_strided_slice %5 {offsets = [0, 0], sizes = [8, 63], strides = [1, 1]} : vector<8x256xf32> to vector<8x63xf32>
    %14 = tpu.concatenate %12, %13 in 1 : vector<8x193xf32>, vector<8x63xf32> -> vector<8x256xf32>
    %15 = vector.extract_strided_slice %5 {offsets = [0, 192], sizes = [8, 64], strides = [1, 1]} : vector<8x256xf32> to vector<8x64xf32>
    %16 = vector.extract_strided_slice %5 {offsets = [0, 0], sizes = [8, 192], strides = [1, 1]} : vector<8x256xf32> to vector<8x192xf32>
    %17 = tpu.concatenate %15, %16 in 1 : vector<8x64xf32>, vector<8x192xf32> -> vector<8x256xf32>
    %18 = vector.extract_strided_slice %5 {offsets = [0, 64], sizes = [8, 192], strides = [1, 1]} : vector<8x256xf32> to vector<8x192xf32>
    %19 = vector.extract_strided_slice %5 {offsets = [0, 0], sizes = [8, 64], strides = [1, 1]} : vector<8x256xf32> to vector<8x64xf32>
    %20 = tpu.concatenate %18, %19 in 1 : vector<8x192xf32>, vector<8x64xf32> -> vector<8x256xf32>
    %21 = vector.extract_strided_slice %5 {offsets = [0, 193], sizes = [8, 63], strides = [1, 1]} : vector<8x256xf32> to vector<8x63xf32>
    %22 = vector.extract_strided_slice %5 {offsets = [0, 0], sizes = [8, 193], strides = [1, 1]} : vector<8x256xf32> to vector<8x193xf32>
    %23 = tpu.concatenate %21, %22 in 1 : vector<8x63xf32>, vector<8x193xf32> -> vector<8x256xf32>
    %24 = vector.extract_strided_slice %5 {offsets = [0, 1], sizes = [8, 255], strides = [1, 1]} : vector<8x256xf32> to vector<8x255xf32>
    %25 = vector.extract_strided_slice %5 {offsets = [0, 0], sizes = [8, 1], strides = [1, 1]} : vector<8x256xf32> to vector<8x1xf32>
    %26 = tpu.concatenate %24, %25 in 1 : vector<8x255xf32>, vector<8x1xf32> -> vector<8x256xf32>
    %27 = vector.extract_strided_slice %5 {offsets = [0, 65], sizes = [8, 191], strides = [1, 1]} : vector<8x256xf32> to vector<8x191xf32>
    %28 = vector.extract_strided_slice %5 {offsets = [0, 0], sizes = [8, 65], strides = [1, 1]} : vector<8x256xf32> to vector<8x65xf32>
    %29 = tpu.concatenate %27, %28 in 1 : vector<8x191xf32>, vector<8x65xf32> -> vector<8x256xf32>
    %30 = tpu.concatenate %8, %11, %14, %17, %5, %20, %23, %26, %29 in 0 : vector<8x256xf32>, vector<8x256xf32>, vector<8x256xf32>, vector<8x256xf32>, vector<8x256xf32>, vector<8x256xf32>, vector<8x256xf32>, vector<8x256xf32>, vector<8x256xf32> -> vector<72x256xf32>
    %31 = arith.truncf %30 : vector<72x256xf32> to vector<72x256xbf16>
    %c0_5 = arith.constant 0 : index
    %c0_6 = arith.constant 0 : index
    %32 = vector.load %arg4[%c0_5, %c0_6] : memref<72x256xbf16, #tpu.memory_space<vmem>>, vector<72x256xbf16>
    %33 = arith.mulf %31, %32 : vector<72x256xbf16>
    %c0_7 = arith.constant 0 : index
    %c0_8 = arith.constant 0 : index
    %c0_9 = arith.constant 0 : index
    %34 = vector.load %arg5[%c0_7, %c0_8, %c0_9] : memref<4x8x72xbf16, #tpu.memory_space<vmem>>, vector<1x8x72xbf16>
    %35 = vector.shape_cast %34 : vector<1x8x72xbf16> to vector<8x72xbf16>
    %cst = arith.constant dense<0.000000e+00> : vector<8x256xf32>
    %36 = tpu.matmul %35, %33, %cst {dimension_numbers = #tpu.dot_dimension_numbers<[1], [0], [0], [1], [0, 0, 1, 1], [], []>} : vector<8x72xbf16>, vector<72x256xbf16>, vector<8x256xf32> -> vector<8x256xf32>
    %c0_10 = arith.constant 0 : index
    %c0_11 = arith.constant 0 : index
    %c0_12 = arith.constant 0 : index
    %37 = vector.load %arg6[%c0_10, %c0_11, %c0_12] : memref<4x8x1xf32, #tpu.memory_space<vmem>>, vector<1x8x1xf32>
    %38 = vector.shape_cast %37 : vector<1x8x1xf32> to vector<8x1xf32>
    %39 = vector.broadcast %38 : vector<8x1xf32> to vector<8x256xf32>
    %40 = arith.addf %36, %39 : vector<8x256xf32>
    %cst_13 = arith.constant 0.000000e+00 : f32
    %41 = vector.broadcast %cst_13 : f32 to vector<8x256xf32>
    %42 = arith.maximumf %40, %41 : vector<8x256xf32>
    %43 = vector.extract_strided_slice %42 {offsets = [0, 191], sizes = [8, 65], strides = [1, 1]} : vector<8x256xf32> to vector<8x65xf32>
    %44 = vector.extract_strided_slice %42 {offsets = [0, 0], sizes = [8, 191], strides = [1, 1]} : vector<8x256xf32> to vector<8x191xf32>
    %45 = tpu.concatenate %43, %44 in 1 : vector<8x65xf32>, vector<8x191xf32> -> vector<8x256xf32>
    %46 = vector.extract_strided_slice %42 {offsets = [0, 255], sizes = [8, 1], strides = [1, 1]} : vector<8x256xf32> to vector<8x1xf32>
    %47 = vector.extract_strided_slice %42 {offsets = [0, 0], sizes = [8, 255], strides = [1, 1]} : vector<8x256xf32> to vector<8x255xf32>
    %48 = tpu.concatenate %46, %47 in 1 : vector<8x1xf32>, vector<8x255xf32> -> vector<8x256xf32>
    %49 = vector.extract_strided_slice %42 {offsets = [0, 63], sizes = [8, 193], strides = [1, 1]} : vector<8x256xf32> to vector<8x193xf32>
    %50 = vector.extract_strided_slice %42 {offsets = [0, 0], sizes = [8, 63], strides = [1, 1]} : vector<8x256xf32> to vector<8x63xf32>
    %51 = tpu.concatenate %49, %50 in 1 : vector<8x193xf32>, vector<8x63xf32> -> vector<8x256xf32>
    %52 = vector.extract_strided_slice %42 {offsets = [0, 192], sizes = [8, 64], strides = [1, 1]} : vector<8x256xf32> to vector<8x64xf32>
    %53 = vector.extract_strided_slice %42 {offsets = [0, 0], sizes = [8, 192], strides = [1, 1]} : vector<8x256xf32> to vector<8x192xf32>
    %54 = tpu.concatenate %52, %53 in 1 : vector<8x64xf32>, vector<8x192xf32> -> vector<8x256xf32>
    %55 = vector.extract_strided_slice %42 {offsets = [0, 64], sizes = [8, 192], strides = [1, 1]} : vector<8x256xf32> to vector<8x192xf32>
    %56 = vector.extract_strided_slice %42 {offsets = [0, 0], sizes = [8, 64], strides = [1, 1]} : vector<8x256xf32> to vector<8x64xf32>
    %57 = tpu.concatenate %55, %56 in 1 : vector<8x192xf32>, vector<8x64xf32> -> vector<8x256xf32>
    %58 = vector.extract_strided_slice %42 {offsets = [0, 193], sizes = [8, 63], strides = [1, 1]} : vector<8x256xf32> to vector<8x63xf32>
    %59 = vector.extract_strided_slice %42 {offsets = [0, 0], sizes = [8, 193], strides = [1, 1]} : vector<8x256xf32> to vector<8x193xf32>
    %60 = tpu.concatenate %58, %59 in 1 : vector<8x63xf32>, vector<8x193xf32> -> vector<8x256xf32>
    %61 = vector.extract_strided_slice %42 {offsets = [0, 1], sizes = [8, 255], strides = [1, 1]} : vector<8x256xf32> to vector<8x255xf32>
    %62 = vector.extract_strided_slice %42 {offsets = [0, 0], sizes = [8, 1], strides = [1, 1]} : vector<8x256xf32> to vector<8x1xf32>
    %63 = tpu.concatenate %61, %62 in 1 : vector<8x255xf32>, vector<8x1xf32> -> vector<8x256xf32>
    %64 = vector.extract_strided_slice %42 {offsets = [0, 65], sizes = [8, 191], strides = [1, 1]} : vector<8x256xf32> to vector<8x191xf32>
    %65 = vector.extract_strided_slice %42 {offsets = [0, 0], sizes = [8, 65], strides = [1, 1]} : vector<8x256xf32> to vector<8x65xf32>
    %66 = tpu.concatenate %64, %65 in 1 : vector<8x191xf32>, vector<8x65xf32> -> vector<8x256xf32>
    %67 = tpu.concatenate %45, %48, %51, %54, %42, %57, %60, %63, %66 in 0 : vector<8x256xf32>, vector<8x256xf32>, vector<8x256xf32>, vector<8x256xf32>, vector<8x256xf32>, vector<8x256xf32>, vector<8x256xf32>, vector<8x256xf32>, vector<8x256xf32> -> vector<72x256xf32>
    %68 = arith.truncf %67 : vector<72x256xf32> to vector<72x256xbf16>
    %c0_14 = arith.constant 0 : index
    %c0_15 = arith.constant 0 : index
    %69 = vector.load %arg4[%c0_14, %c0_15] : memref<72x256xbf16, #tpu.memory_space<vmem>>, vector<72x256xbf16>
    %70 = arith.mulf %68, %69 : vector<72x256xbf16>
    %c1 = arith.constant 1 : index
    %c0_16 = arith.constant 0 : index
    %c0_17 = arith.constant 0 : index
    %71 = vector.load %arg5[%c1, %c0_16, %c0_17] : memref<4x8x72xbf16, #tpu.memory_space<vmem>>, vector<1x8x72xbf16>
    %72 = vector.shape_cast %71 : vector<1x8x72xbf16> to vector<8x72xbf16>
    %cst_18 = arith.constant dense<0.000000e+00> : vector<8x256xf32>
    %73 = tpu.matmul %72, %70, %cst_18 {dimension_numbers = #tpu.dot_dimension_numbers<[1], [0], [0], [1], [0, 0, 1, 1], [], []>} : vector<8x72xbf16>, vector<72x256xbf16>, vector<8x256xf32> -> vector<8x256xf32>
    %c1_19 = arith.constant 1 : index
    %c0_20 = arith.constant 0 : index
    %c0_21 = arith.constant 0 : index
    %74 = vector.load %arg6[%c1_19, %c0_20, %c0_21] : memref<4x8x1xf32, #tpu.memory_space<vmem>>, vector<1x8x1xf32>
    %75 = vector.shape_cast %74 : vector<1x8x1xf32> to vector<8x1xf32>
    %76 = vector.broadcast %75 : vector<8x1xf32> to vector<8x256xf32>
    %77 = arith.addf %73, %76 : vector<8x256xf32>
    %cst_22 = arith.constant 0.000000e+00 : f32
    %78 = vector.broadcast %cst_22 : f32 to vector<8x256xf32>
    %79 = arith.maximumf %77, %78 : vector<8x256xf32>
    %80 = vector.extract_strided_slice %79 {offsets = [0, 191], sizes = [8, 65], strides = [1, 1]} : vector<8x256xf32> to vector<8x65xf32>
    %81 = vector.extract_strided_slice %79 {offsets = [0, 0], sizes = [8, 191], strides = [1, 1]} : vector<8x256xf32> to vector<8x191xf32>
    %82 = tpu.concatenate %80, %81 in 1 : vector<8x65xf32>, vector<8x191xf32> -> vector<8x256xf32>
    %83 = vector.extract_strided_slice %79 {offsets = [0, 255], sizes = [8, 1], strides = [1, 1]} : vector<8x256xf32> to vector<8x1xf32>
    %84 = vector.extract_strided_slice %79 {offsets = [0, 0], sizes = [8, 255], strides = [1, 1]} : vector<8x256xf32> to vector<8x255xf32>
    %85 = tpu.concatenate %83, %84 in 1 : vector<8x1xf32>, vector<8x255xf32> -> vector<8x256xf32>
    %86 = vector.extract_strided_slice %79 {offsets = [0, 63], sizes = [8, 193], strides = [1, 1]} : vector<8x256xf32> to vector<8x193xf32>
    %87 = vector.extract_strided_slice %79 {offsets = [0, 0], sizes = [8, 63], strides = [1, 1]} : vector<8x256xf32> to vector<8x63xf32>
    %88 = tpu.concatenate %86, %87 in 1 : vector<8x193xf32>, vector<8x63xf32> -> vector<8x256xf32>
    %89 = vector.extract_strided_slice %79 {offsets = [0, 192], sizes = [8, 64], strides = [1, 1]} : vector<8x256xf32> to vector<8x64xf32>
    %90 = vector.extract_strided_slice %79 {offsets = [0, 0], sizes = [8, 192], strides = [1, 1]} : vector<8x256xf32> to vector<8x192xf32>
    %91 = tpu.concatenate %89, %90 in 1 : vector<8x64xf32>, vector<8x192xf32> -> vector<8x256xf32>
    %92 = vector.extract_strided_slice %79 {offsets = [0, 64], sizes = [8, 192], strides = [1, 1]} : vector<8x256xf32> to vector<8x192xf32>
    %93 = vector.extract_strided_slice %79 {offsets = [0, 0], sizes = [8, 64], strides = [1, 1]} : vector<8x256xf32> to vector<8x64xf32>
    %94 = tpu.concatenate %92, %93 in 1 : vector<8x192xf32>, vector<8x64xf32> -> vector<8x256xf32>
    %95 = vector.extract_strided_slice %79 {offsets = [0, 193], sizes = [8, 63], strides = [1, 1]} : vector<8x256xf32> to vector<8x63xf32>
    %96 = vector.extract_strided_slice %79 {offsets = [0, 0], sizes = [8, 193], strides = [1, 1]} : vector<8x256xf32> to vector<8x193xf32>
    %97 = tpu.concatenate %95, %96 in 1 : vector<8x63xf32>, vector<8x193xf32> -> vector<8x256xf32>
    %98 = vector.extract_strided_slice %79 {offsets = [0, 1], sizes = [8, 255], strides = [1, 1]} : vector<8x256xf32> to vector<8x255xf32>
    %99 = vector.extract_strided_slice %79 {offsets = [0, 0], sizes = [8, 1], strides = [1, 1]} : vector<8x256xf32> to vector<8x1xf32>
    %100 = tpu.concatenate %98, %99 in 1 : vector<8x255xf32>, vector<8x1xf32> -> vector<8x256xf32>
    %101 = vector.extract_strided_slice %79 {offsets = [0, 65], sizes = [8, 191], strides = [1, 1]} : vector<8x256xf32> to vector<8x191xf32>
    %102 = vector.extract_strided_slice %79 {offsets = [0, 0], sizes = [8, 65], strides = [1, 1]} : vector<8x256xf32> to vector<8x65xf32>
    %103 = tpu.concatenate %101, %102 in 1 : vector<8x191xf32>, vector<8x65xf32> -> vector<8x256xf32>
    %104 = tpu.concatenate %82, %85, %88, %91, %79, %94, %97, %100, %103 in 0 : vector<8x256xf32>, vector<8x256xf32>, vector<8x256xf32>, vector<8x256xf32>, vector<8x256xf32>, vector<8x256xf32>, vector<8x256xf32>, vector<8x256xf32>, vector<8x256xf32> -> vector<72x256xf32>
    %105 = arith.truncf %104 : vector<72x256xf32> to vector<72x256xbf16>
    %c0_23 = arith.constant 0 : index
    %c0_24 = arith.constant 0 : index
    %106 = vector.load %arg4[%c0_23, %c0_24] : memref<72x256xbf16, #tpu.memory_space<vmem>>, vector<72x256xbf16>
    %107 = arith.mulf %105, %106 : vector<72x256xbf16>
    %c2 = arith.constant 2 : index
    %c0_25 = arith.constant 0 : index
    %c0_26 = arith.constant 0 : index
    %108 = vector.load %arg5[%c2, %c0_25, %c0_26] : memref<4x8x72xbf16, #tpu.memory_space<vmem>>, vector<1x8x72xbf16>
    %109 = vector.shape_cast %108 : vector<1x8x72xbf16> to vector<8x72xbf16>
    %cst_27 = arith.constant dense<0.000000e+00> : vector<8x256xf32>
    %110 = tpu.matmul %109, %107, %cst_27 {dimension_numbers = #tpu.dot_dimension_numbers<[1], [0], [0], [1], [0, 0, 1, 1], [], []>} : vector<8x72xbf16>, vector<72x256xbf16>, vector<8x256xf32> -> vector<8x256xf32>
    %c2_28 = arith.constant 2 : index
    %c0_29 = arith.constant 0 : index
    %c0_30 = arith.constant 0 : index
    %111 = vector.load %arg6[%c2_28, %c0_29, %c0_30] : memref<4x8x1xf32, #tpu.memory_space<vmem>>, vector<1x8x1xf32>
    %112 = vector.shape_cast %111 : vector<1x8x1xf32> to vector<8x1xf32>
    %113 = vector.broadcast %112 : vector<8x1xf32> to vector<8x256xf32>
    %114 = arith.addf %110, %113 : vector<8x256xf32>
    %cst_31 = arith.constant 0.000000e+00 : f32
    %115 = vector.broadcast %cst_31 : f32 to vector<8x256xf32>
    %116 = arith.maximumf %114, %115 : vector<8x256xf32>
    %117 = arith.addf %116, %42 : vector<8x256xf32>
    %118 = vector.extract_strided_slice %117 {offsets = [0, 191], sizes = [8, 65], strides = [1, 1]} : vector<8x256xf32> to vector<8x65xf32>
    %119 = vector.extract_strided_slice %117 {offsets = [0, 0], sizes = [8, 191], strides = [1, 1]} : vector<8x256xf32> to vector<8x191xf32>
    %120 = tpu.concatenate %118, %119 in 1 : vector<8x65xf32>, vector<8x191xf32> -> vector<8x256xf32>
    %121 = vector.extract_strided_slice %117 {offsets = [0, 255], sizes = [8, 1], strides = [1, 1]} : vector<8x256xf32> to vector<8x1xf32>
    %122 = vector.extract_strided_slice %117 {offsets = [0, 0], sizes = [8, 255], strides = [1, 1]} : vector<8x256xf32> to vector<8x255xf32>
    %123 = tpu.concatenate %121, %122 in 1 : vector<8x1xf32>, vector<8x255xf32> -> vector<8x256xf32>
    %124 = vector.extract_strided_slice %117 {offsets = [0, 63], sizes = [8, 193], strides = [1, 1]} : vector<8x256xf32> to vector<8x193xf32>
    %125 = vector.extract_strided_slice %117 {offsets = [0, 0], sizes = [8, 63], strides = [1, 1]} : vector<8x256xf32> to vector<8x63xf32>
    %126 = tpu.concatenate %124, %125 in 1 : vector<8x193xf32>, vector<8x63xf32> -> vector<8x256xf32>
    %127 = vector.extract_strided_slice %117 {offsets = [0, 192], sizes = [8, 64], strides = [1, 1]} : vector<8x256xf32> to vector<8x64xf32>
    %128 = vector.extract_strided_slice %117 {offsets = [0, 0], sizes = [8, 192], strides = [1, 1]} : vector<8x256xf32> to vector<8x192xf32>
    %129 = tpu.concatenate %127, %128 in 1 : vector<8x64xf32>, vector<8x192xf32> -> vector<8x256xf32>
    %130 = vector.extract_strided_slice %117 {offsets = [0, 64], sizes = [8, 192], strides = [1, 1]} : vector<8x256xf32> to vector<8x192xf32>
    %131 = vector.extract_strided_slice %117 {offsets = [0, 0], sizes = [8, 64], strides = [1, 1]} : vector<8x256xf32> to vector<8x64xf32>
    %132 = tpu.concatenate %130, %131 in 1 : vector<8x192xf32>, vector<8x64xf32> -> vector<8x256xf32>
    %133 = vector.extract_strided_slice %117 {offsets = [0, 193], sizes = [8, 63], strides = [1, 1]} : vector<8x256xf32> to vector<8x63xf32>
    %134 = vector.extract_strided_slice %117 {offsets = [0, 0], sizes = [8, 193], strides = [1, 1]} : vector<8x256xf32> to vector<8x193xf32>
    %135 = tpu.concatenate %133, %134 in 1 : vector<8x63xf32>, vector<8x193xf32> -> vector<8x256xf32>
    %136 = vector.extract_strided_slice %117 {offsets = [0, 1], sizes = [8, 255], strides = [1, 1]} : vector<8x256xf32> to vector<8x255xf32>
    %137 = vector.extract_strided_slice %117 {offsets = [0, 0], sizes = [8, 1], strides = [1, 1]} : vector<8x256xf32> to vector<8x1xf32>
    %138 = tpu.concatenate %136, %137 in 1 : vector<8x255xf32>, vector<8x1xf32> -> vector<8x256xf32>
    %139 = vector.extract_strided_slice %117 {offsets = [0, 65], sizes = [8, 191], strides = [1, 1]} : vector<8x256xf32> to vector<8x191xf32>
    %140 = vector.extract_strided_slice %117 {offsets = [0, 0], sizes = [8, 65], strides = [1, 1]} : vector<8x256xf32> to vector<8x65xf32>
    %141 = tpu.concatenate %139, %140 in 1 : vector<8x191xf32>, vector<8x65xf32> -> vector<8x256xf32>
    %142 = tpu.concatenate %120, %123, %126, %129, %117, %132, %135, %138, %141 in 0 : vector<8x256xf32>, vector<8x256xf32>, vector<8x256xf32>, vector<8x256xf32>, vector<8x256xf32>, vector<8x256xf32>, vector<8x256xf32>, vector<8x256xf32>, vector<8x256xf32> -> vector<72x256xf32>
    %143 = arith.truncf %142 : vector<72x256xf32> to vector<72x256xbf16>
    %c0_32 = arith.constant 0 : index
    %c0_33 = arith.constant 0 : index
    %144 = vector.load %arg4[%c0_32, %c0_33] : memref<72x256xbf16, #tpu.memory_space<vmem>>, vector<72x256xbf16>
    %145 = arith.mulf %143, %144 : vector<72x256xbf16>
    %c3 = arith.constant 3 : index
    %c0_34 = arith.constant 0 : index
    %c0_35 = arith.constant 0 : index
    %146 = vector.load %arg5[%c3, %c0_34, %c0_35] : memref<4x8x72xbf16, #tpu.memory_space<vmem>>, vector<1x8x72xbf16>
    %147 = vector.shape_cast %146 : vector<1x8x72xbf16> to vector<8x72xbf16>
    %cst_36 = arith.constant dense<0.000000e+00> : vector<8x256xf32>
    %148 = tpu.matmul %147, %145, %cst_36 {dimension_numbers = #tpu.dot_dimension_numbers<[1], [0], [0], [1], [0, 0, 1, 1], [], []>} : vector<8x72xbf16>, vector<72x256xbf16>, vector<8x256xf32> -> vector<8x256xf32>
    %c3_37 = arith.constant 3 : index
    %c0_38 = arith.constant 0 : index
    %c0_39 = arith.constant 0 : index
    %149 = vector.load %arg6[%c3_37, %c0_38, %c0_39] : memref<4x8x1xf32, #tpu.memory_space<vmem>>, vector<1x8x1xf32>
    %150 = vector.shape_cast %149 : vector<1x8x1xf32> to vector<8x1xf32>
    %151 = vector.broadcast %150 : vector<8x1xf32> to vector<8x256xf32>
    %152 = arith.addf %148, %151 : vector<8x256xf32>
    %c0_40 = arith.constant 0 : index
    %c0_41 = arith.constant 0 : index
    %c0_42 = arith.constant 0 : index
    %153 = vector.load %arg3[%c0_40, %c0_41, %c0_42] : memref<1x256x1xi32, #tpu.memory_space<vmem>>, vector<1x256x1xi32>
    %154 = vector.shape_cast %153 : vector<1x256x1xi32> to vector<256x1xi32>
    %155 = tpu.iota {dimensions = array<i32: 1>} : vector<256x256xi32>
    %156 = vector.broadcast %154 : vector<256x1xi32> to vector<256x256xi32>
    %157 = arith.cmpi eq, %155, %156 : vector<256x256xi32>
    %158 = arith.extui %157 : vector<256x256xi1> to vector<256x256xi32>
    %159 = arith.sitofp %158 : vector<256x256xi32> to vector<256x256xf32>
    %160 = arith.truncf %159 : vector<256x256xf32> to vector<256x256xbf16>
    %161 = arith.truncf %152 : vector<8x256xf32> to vector<8x256xbf16>
    %cst_43 = arith.constant dense<0.000000e+00> : vector<8x256xf32>
    %162 = tpu.matmul %161, %160, %cst_43 {dimension_numbers = #tpu.dot_dimension_numbers<[1], [0], [0], [1], [0, 0, 1, 1], [], []>} : vector<8x256xbf16>, vector<256x256xbf16>, vector<8x256xf32> -> vector<8x256xf32>
    %c0_44 = arith.constant 0 : index
    %c0_45 = arith.constant 0 : index
    %c0_46 = arith.constant 0 : index
    %163 = vector.load %arg7[%c0_44, %c0_45, %c0_46] : memref<1x8x256xf32, #tpu.memory_space<vmem>>, vector<1x8x256xf32>
    %164 = vector.shape_cast %163 : vector<1x8x256xf32> to vector<8x256xf32>
    %165 = vector.shape_cast %162 : vector<8x256xf32> to vector<1x8x256xf32>
    tpu.vector_store %arg7[%c0_44, %c0_45, %c0_46], %165 {strides = array<i32>} : memref<1x8x256xf32, #tpu.memory_space<vmem>>, vector<1x8x256xf32>,
    return
  }
  func.func @transform_0(%arg0: i32) -> (i32, i32, i32) {
    %c0_i32 = arith.constant 0 : i32
    %c0_i32_0 = arith.constant 0 : i32
    %c0_i32_1 = arith.constant 0 : i32
    return %arg0, %c0_i32, %c0_i32_0 : i32, i32, i32
  }
  func.func @transform_1(%arg0: i32) -> (i32, i32, i32) {
    %c0_i32 = arith.constant 0 : i32
    %c0_i32_0 = arith.constant 0 : i32
    %c0_i32_1 = arith.constant 0 : i32
    return %arg0, %c0_i32, %c0_i32_0 : i32, i32, i32
  }
  func.func @transform_2(%arg0: i32) -> (i32, i32, i32) {
    %c0_i32 = arith.constant 0 : i32
    %c0_i32_0 = arith.constant 0 : i32
    %c0_i32_1 = arith.constant 0 : i32
    return %arg0, %c0_i32, %c0_i32_0 : i32, i32, i32
  }
  func.func @transform_3(%arg0: i32) -> (i32, i32) {
    %c0_i32 = arith.constant 0 : i32
    %c0_i32_0 = arith.constant 0 : i32
    %c0_i32_1 = arith.constant 0 : i32
    return %c0_i32, %c0_i32_0 : i32, i32
  }
  func.func @transform_4(%arg0: i32) -> (i32, i32, i32) {
    %c0_i32 = arith.constant 0 : i32
    %c0_i32_0 = arith.constant 0 : i32
    %c0_i32_1 = arith.constant 0 : i32
    %c0_i32_2 = arith.constant 0 : i32
    return %c0_i32, %c0_i32_0, %c0_i32_1 : i32, i32, i32
  }
  func.func @transform_5(%arg0: i32) -> (i32, i32, i32) {
    %c0_i32 = arith.constant 0 : i32
    %c0_i32_0 = arith.constant 0 : i32
    %c0_i32_1 = arith.constant 0 : i32
    %c0_i32_2 = arith.constant 0 : i32
    return %c0_i32, %c0_i32_0, %c0_i32_1 : i32, i32, i32
  }
  func.func @transform_6(%arg0: i32) -> (i32, i32, i32) {
    %c0_i32 = arith.constant 0 : i32
    %c0_i32_0 = arith.constant 0 : i32
    %c0_i32_1 = arith.constant 0 : i32
    return %arg0, %c0_i32, %c0_i32_0 : i32, i32, i32
  }
}

</mosaic_0001>

<llo_original>
// kernel: tpu_custom_call.1
$region0: #{tpu_custom_call.1}
  #allocation0 [shape = 'u32[]', space=smem, size = 0x4, offset = 0x4, fixed_abs, tag = 'smem constant byte address 0x4 - core index']
  #allocation1 [shape = 'u32[144,128]{1,0:T(1,128)}', space=vmem, size = 0x12000, scoped, tag = 'internal scratch']
  %s0 = inlined_call_operand.vmem [shape: f32[2,8,256], index: 0, kind: input, shape index: {}]
  %s1 = inlined_call_operand.vmem [shape: f32[2,1,256], index: 1, kind: input, shape index: {}]
  %s2 = inlined_call_operand.vmem [shape: s32[2,256,1], index: 2, kind: input, shape index: {}]
  %s3 = inlined_call_operand.vmem [shape: bf16[72,256], index: 3, kind: input, shape index: {}]
  %s4 = inlined_call_operand.vmem [shape: bf16[4,8,72], index: 4, kind: input, shape index: {}]
  %s5 = inlined_call_operand.vmem [shape: f32[4,8,1], index: 5, kind: input, shape index: {}]
  %s6 = inlined_call_operand.hbm [shape: f32[2,8,256], index: 6, kind: output, shape index: {}]
  %s7 = sld [smem:[#allocation0]]
  $region57: #{tpu_custom_call.1} parent=0
    _
  %s9 = ssub.s32 1, %s7
  %s10 = scalar_select 0, %s9, %s7
  $region1: #{tpu_custom_call.1} parent=0
    #allocation2 [shape = 'u8[16384]{0}', space=vmem, size = 0x4000, scoped, tag = 'output window, operand 0']
    #allocation3 [shape = 's32[2]{0}', space=sflag, size = 0x8, scoped, tag = 'scoped memory for tpu_custom_call.1']
    %11 = vsyncpa [#allocation3], 0
    %s12 = scalar_lea.sflag [#allocation3], 1
    %13 = vsyncpa %s12, 0
    loop: start=0, step=1, limit=4
    $region2: #{tpu_custom_call.1} parent=1 // loop_pre_header
      _
    $region3: #{tpu_custom_call.1} parent=1 // loop_header
      %s15 = sphi 0, %s19
      %p16 = scmp.ge.s32.totalorder %s15, 4
      %s25 = sphi 0, %s27
      %s28 = sphi 0, %s25
      %s29 = sphi 0, %s28
      %s45 = sphi 0, %s29
      %s51 = sphi 0, %s53
      %s54 = sphi 0, %s51
      %s55 = sphi 0, %s54
      %s71 = sphi 0, %s55
      %s77 = sphi 0, %s79
      %s80 = sphi 0, %s77
      %s81 = sphi 0, %s80
      %s97 = sphi 0, %s81
      %s101 = sphi 0, %s101
      %s103 = sphi 0, %s101
      %s104 = sphi 0, %s103
      %s118 = sphi 0, %s104
      %s122 = sphi 0, %s122
      %s124 = sphi 0, %s122
      %s125 = sphi 0, %s124
      %s139 = sphi 0, %s125
      %s143 = sphi 0, %s143
      %s145 = sphi 0, %s143
      %s146 = sphi 0, %s145
      %s160 = sphi 0, %s146
      %s166 = sphi 0, %s168
      %s169 = sphi 0, %s166
      %s170 = sphi 0, %s169
      %s186 = sphi 0, %s170
    $region4: #{tpu_custom_call.1} parent=1 // loop_header_branch
      %18 = sbr.rel (%p16) target = $region8
    $region5: #{tpu_custom_call.1} parent=1 // loop_body
      %s20 = ssub.s32 %s15, 1
      %s21 = ssub.s32 %s15, 2
      %s22 = sadd.s32 %s15, 1
      %s23 = ssub.s32 %s15, %s22
      %p24 = scmp.eq.s32.totalorder %s23, 0
      %s26 = sadd.s32 %s25, 1
      %s27 = scalar_select %p24, %s25, %s26
      %p30 = pneg %p24
      %p31 = scmp.eq.s32.totalorder %s15, 1
      %p32 = por %p30, %p31
      %p33 = scmp.ne.s32.totalorder %s25, %s28
      %p34 = scmp.eq.s32.totalorder %s15, 0
      %p35 = por %p33, %p34
      %p36 = scmp.ne.s32.totalorder %s25, %s28
      %p37 = scmp.eq.s32.totalorder %s20, 1
      %p38 = por %p36, %p37
      %p39 = scmp.ne.s32.totalorder %s28, %s29
      %p40 = scmp.eq.s32.totalorder %s20, 0
      %p41 = por %p39, %p40
      %p42 = scmp.ne.s32.totalorder %s28, %s29
      %p43 = scmp.eq.s32.totalorder %s21, 1
      %p44 = por %p42, %p43
      %p46 = scmp.ne.s32.totalorder %s29, %s45
      %p47 = scmp.eq.s32.totalorder %s21, 0
      %p48 = por %p46, %p47
      %s49 = ssub.s32 %s15, %s22
      %p50 = scmp.eq.s32.totalorder %s49, 0
      %s52 = sadd.s32 %s51, 1
      %s53 = scalar_select %p50, %s51, %s52
      %p56 = pneg %p50
      %p57 = scmp.eq.s32.totalorder %s15, 1
      %p58 = por %p56, %p57
      %p59 = scmp.ne.s32.totalorder %s51, %s54
      %p60 = scmp.eq.s32.totalorder %s15, 0
      %p61 = por %p59, %p60
      %p62 = scmp.ne.s32.totalorder %s51, %s54
      %p63 = scmp.eq.s32.totalorder %s20, 1
      %p64 = por %p62, %p63
      %p65 = scmp.ne.s32.totalorder %s54, %s55
      %p66 = scmp.eq.s32.totalorder %s20, 0
      %p67 = por %p65, %p66
      %p68 = scmp.ne.s32.totalorder %s54, %s55
      %p69 = scmp.eq.s32.totalorder %s21, 1
      %p70 = por %p68, %p69
      %p72 = scmp.ne.s32.totalorder %s55, %s71
      %p73 = scmp.eq.s32.totalorder %s21, 0
      %p74 = por %p72, %p73
      %s75 = ssub.s32 %s15, %s22
      %p76 = scmp.eq.s32.totalorder %s75, 0
      %s78 = sadd.s32 %s77, 1
      %s79 = scalar_select %p76, %s77, %s78
      %p82 = pneg %p76
      %p83 = scmp.eq.s32.totalorder %s15, 1
      %p84 = por %p82, %p83
      %p85 = scmp.ne.s32.totalorder %s77, %s80
      %p86 = scmp.eq.s32.totalorder %s15, 0
      %p87 = por %p85, %p86
      %p88 = scmp.ne.s32.totalorder %s77, %s80
      %p89 = scmp.eq.s32.totalorder %s20, 1
      %p90 = por %p88, %p89
      %p91 = scmp.ne.s32.totalorder %s80, %s81
      %p92 = scmp.eq.s32.totalorder %s20, 0
      %p93 = por %p91, %p92
      %p94 = scmp.ne.s32.totalorder %s80, %s81
      %p95 = scmp.eq.s32.totalorder %s21, 1
      %p96 = por %p94, %p95
      %p98 = scmp.ne.s32.totalorder %s81, %s97
      %p99 = scmp.eq.s32.totalorder %s21, 0
      %p100 = por %p98, %p99
      %s102 = sadd.s32 %s101, 1
      %p105 = scmp.eq.s32.totalorder %s15, 1
      %p106 = scmp.ne.s32.totalorder %s101, %s103
      %p107 = scmp.eq.s32.totalorder %s15, 0
      %p108 = por %p106, %p107
      %p109 = scmp.ne.s32.totalorder %s101, %s103
      %p110 = scmp.eq.s32.totalorder %s20, 1
      %p111 = por %p109, %p110
      %p112 = scmp.ne.s32.totalorder %s103, %s104
      %p113 = scmp.eq.s32.totalorder %s20, 0
      %p114 = por %p112, %p113
      %p115 = scmp.ne.s32.totalorder %s103, %s104
      %p116 = scmp.eq.s32.totalorder %s21, 1
      %p117 = por %p115, %p116
      %p119 = scmp.ne.s32.totalorder %s104, %s118
      %p120 = scmp.eq.s32.totalorder %s21, 0
      %p121 = por %p119, %p120
      %s123 = sadd.s32 %s122, 1
      %p126 = scmp.eq.s32.totalorder %s15, 1
      %p127 = scmp.ne.s32.totalorder %s122, %s124
      %p128 = scmp.eq.s32.totalorder %s15, 0
      %p129 = por %p127, %p128
      %p130 = scmp.ne.s32.totalorder %s122, %s124
      %p131 = scmp.eq.s32.totalorder %s20, 1
      %p132 = por %p130, %p131
      %p133 = scmp.ne.s32.totalorder %s124, %s125
      %p134 = scmp.eq.s32.totalorder %s20, 0
      %p135 = por %p133, %p134
      %p136 = scmp.ne.s32.totalorder %s124, %s125
      %p137 = scmp.eq.s32.totalorder %s21, 1
      %p138 = por %p136, %p137
      %p140 = scmp.ne.s32.totalorder %s125, %s139
      %p141 = scmp.eq.s32.totalorder %s21, 0
      %p142 = por %p140, %p141
      %s144 = sadd.s32 %s143, 1
      %p147 = scmp.eq.s32.totalorder %s15, 1
      %p148 = scmp.ne.s32.totalorder %s143, %s145
      %p149 = scmp.eq.s32.totalorder %s15, 0
      %p150 = por %p148, %p149
      %p151 = scmp.ne.s32.totalorder %s143, %s145
      %p152 = scmp.eq.s32.totalorder %s20, 1
      %p153 = por %p151, %p152
      %p154 = scmp.ne.s32.totalorder %s145, %s146
      %p155 = scmp.eq.s32.totalorder %s20, 0
      %p156 = por %p154, %p155
      %p157 = scmp.ne.s32.totalorder %s145, %s146
      %p158 = scmp.eq.s32.totalorder %s21, 1
      %p159 = por %p157, %p158
      %p161 = scmp.ne.s32.totalorder %s146, %s160
      %p162 = scmp.eq.s32.totalorder %s21, 0
      %p163 = por %p161, %p162
      %s164 = ssub.s32 %s15, %s22
      %p165 = scmp.eq.s32.totalorder %s164, 0
      %s167 = sadd.s32 %s166, 1
      %s168 = scalar_select %p165, %s166, %s167
      %p171 = pneg %p165
      %p172 = scmp.eq.s32.totalorder %s15, 1
      %p173 = por %p171, %p172
      %p174 = scmp.ne.s32.totalorder %s166, %s169
      %p175 = scmp.eq.s32.totalorder %s15, 0
      %p176 = por %p174, %p175
      %p177 = scmp.ne.s32.totalorder %s166, %s169
      %p178 = scmp.eq.s32.totalorder %s20, 1
      %p179 = por %p177, %p178
      %p180 = scmp.ne.s32.totalorder %s169, %s170
      %p181 = scmp.eq.s32.totalorder %s20, 0
      %p182 = por %p180, %p181
      %p183 = scmp.ne.s32.totalorder %s169, %s170
      %p184 = scmp.eq.s32.totalorder %s21, 1
      %p185 = por %p183, %p184
      %p187 = scmp.ne.s32.totalorder %s170, %s186
      %p188 = scmp.eq.s32.totalorder %s21, 0
      %p189 = por %p187, %p188
      %p190 = scmp.le.s32.totalorder 1, %s15
      %p191 = scmp.lt.s32.totalorder %s15, 3
      %p192 = pnand %p190, %p191
      %p193 = pneg %p192
      // Predicated region
      $region9: #{tpu_custom_call.1} parent=5 // pred_check
        _
      $region10: #{tpu_custom_call.1} parent=5 // pred_check_branch
        %195 = sbr.rel (%p192) target = $region12
      $region11: #{tpu_custom_call.1} parent=5 // pred_region
        %s196 = ssub.s32 %s15, 1
        // Predicated region
        $region13: #{tpu_custom_call.1} parent=11 // pred_check
          %p197 = pneg %p114
        $region14: #{tpu_custom_call.1} parent=11 // pred_check_branch
          %199 = sbr.rel (%p197) target = $region16
        $region15: #{tpu_custom_call.1} parent=11 // pred_region
          _
        $region16: #{tpu_custom_call.1} parent=11 // pred_fallthru
          _
        // Predicated region
        $region17: #{tpu_custom_call.1} parent=11 // pred_check
          %p200 = pneg %p135
        $region18: #{tpu_custom_call.1} parent=11 // pred_check_branch
          %202 = sbr.rel (%p200) target = $region20
        $region19: #{tpu_custom_call.1} parent=11 // pred_region
          _
        $region20: #{tpu_custom_call.1} parent=11 // pred_fallthru
          _
        // Predicated region
        $region21: #{tpu_custom_call.1} parent=11 // pred_check
          %p203 = pneg %p156
        $region22: #{tpu_custom_call.1} parent=11 // pred_check_branch
          %205 = sbr.rel (%p203) target = $region24
        $region23: #{tpu_custom_call.1} parent=11 // pred_region
          _
        $region24: #{tpu_custom_call.1} parent=11 // pred_fallthru
          _
      $region12: #{tpu_custom_call.1} parent=5 // pred_fallthru
        _
      %p206 = scmp.lt.s32.totalorder %s15, 2
      // Predicated region
      $region25: #{tpu_custom_call.1} parent=5 // pred_check
        %p207 = pneg %p206
      $region26: #{tpu_custom_call.1} parent=5 // pred_check_branch
        %209 = sbr.rel (%p207) target = $region28
      $region27: #{tpu_custom_call.1} parent=5 // pred_region
        // Predicated region
        $region29: #{tpu_custom_call.1} parent=27 // pred_check
          %p210 = pneg %p35
        $region30: #{tpu_custom_call.1} parent=27 // pred_check_branch
          %212 = sbr.rel (%p210) target = $region32
        $region31: #{tpu_custom_call.1} parent=27 // pred_region
          %p213 = scmp.lt.s32.totalorder %s15, 1
          %s214 = scalar_select %p213, %s15, 1
          %s215 = smul.addr %s214, 2
          %s216 = smul.addr %s215, 8
          %s217 = scalar_lea.vmem %s0, %s216
        $region32: #{tpu_custom_call.1} parent=27 // pred_fallthru
          _
        // Predicated region
        $region33: #{tpu_custom_call.1} parent=27 // pred_check
          %p218 = pneg %p61
        $region34: #{tpu_custom_call.1} parent=27 // pred_check_branch
          %220 = sbr.rel (%p218) target = $region36
        $region35: #{tpu_custom_call.1} parent=27 // pred_region
          %p221 = scmp.lt.s32.totalorder %s15, 1
          %s222 = scalar_select %p221, %s15, 1
          %s223 = smul.addr %s222, 2
          %s224 = scalar_lea.vmem %s1, %s223
        $region36: #{tpu_custom_call.1} parent=27 // pred_fallthru
          _
        // Predicated region
        $region37: #{tpu_custom_call.1} parent=27 // pred_check
          %p225 = pneg %p87
        $region38: #{tpu_custom_call.1} parent=27 // pred_check_branch
          %227 = sbr.rel (%p225) target = $region40
        $region39: #{tpu_custom_call.1} parent=27 // pred_region
          %p228 = scmp.lt.s32.totalorder %s15, 1
          %s229 = scalar_select %p228, %s15, 1
          %s230 = smul.addr %s229, 32
          %s231 = smul.addr %s230, 8
          %s232 = scalar_lea.vmem %s2, %s231
        $region40: #{tpu_custom_call.1} parent=27 // pred_fallthru
          _
      $region28: #{tpu_custom_call.1} parent=5 // pred_fallthru
        _
      %p233 = scmp.le.s32.totalorder 1, %s15
      %p234 = scmp.lt.s32.totalorder %s15, 3
      %p235 = pnand %p233, %p234
      %p236 = pneg %p235
      // Predicated region
      $region41: #{tpu_custom_call.1} parent=5 // pred_check
        _
      $region42: #{tpu_custom_call.1} parent=5 // pred_check_branch
        %238 = sbr.rel (%p235) target = $region44
      $region43: #{tpu_custom_call.1} parent=5 // pred_region
        %s239 = ssub.s32 %s15, 1
        %p240 = scmp.lt.s32.totalorder %s20, 1
        %s241 = scalar_select %p240, %s20, 1
        %s242 = smul.addr %s241, 2
        %s243 = smul.addr %s242, 8
        %s244 = scalar_lea.vmem %s0, %s243
        %p245 = pneg %p41
        %p246 = pneg %p38
        %p247 = scmp.lt.s32.totalorder %s20, 1
        %s248 = scalar_select %p247, %s20, 1
        %s249 = smul.addr %s248, 2
        %s250 = scalar_lea.vmem %s1, %s249
        %p251 = pneg %p67
        %p252 = pneg %p64
        %p253 = scmp.lt.s32.totalorder %s20, 1
        %s254 = scalar_select %p253, %s20, 1
        %s255 = smul.addr %s254, 32
        %s256 = smul.addr %s255, 8
        %s257 = scalar_lea.vmem %s2, %s256
        %p258 = pneg %p93
        %p259 = pneg %p90
        %p260 = pneg %p114
        %p261 = pneg %p111
        %p262 = pneg %p135
        %p263 = pneg %p132
        %p264 = pneg %p156
        %p265 = pneg %p153
        %p266 = pneg %p182
        %p267 = pneg %p179
        %s268 = sand.u32 %s169, 1
        %s269 = scalar_lea.sflag [#allocation3], %s268
        %s270 = sand.u32 %s169, 1
        %s271 = smul.addr %s270, 16
        %s272 = scalar_lea.vmem [#allocation2], %s271
        %p273 = scmp.lt.s32.totalorder %s20, 1
        %s274 = scalar_select %p273, %s20, 1
        %s275 = smul.addr %s274, 2
        %s276 = smul.addr %s275, 8
        %s277 = scalar_lea.vmem %s0, %s276
        %p278 = scmp.lt.s32.totalorder %s20, 1
        %s279 = scalar_select %p278, %s20, 1
        %s280 = smul.addr %s279, 2
        %s281 = scalar_lea.vmem %s1, %s280
        %p282 = scmp.lt.s32.totalorder %s20, 1
        %s283 = scalar_select %p282, %s20, 1
        %s284 = smul.addr %s283, 32
        %s285 = smul.addr %s284, 8
        %s286 = scalar_lea.vmem %s2, %s285
        %v288 = vld [vmem:[%s277] sm:$0xff]
        %v289 = vld [vmem:[%s277 + $0x8] sm:$0xff]
        %v290 = vld [vmem:[%s281] sm:$0x3]
        %v292 = vlaneseq
        %v293 = vshrl.u32 %v292, 7
        %v294 = vsub.s32 0, %v293
        %v295 = vrot.slane %v290, %v294
        %v296 = vlaneseq
        %v297 = vshrl.u32 %v296, 7
        %v298 = vsub.s32 1, %v297
        %v299 = vrot.slane %v290, %v298
        %v302 = vmul.f32 %v288, %v295
        %v303 = vmul.f32 %v289, %v299
        %305 = vrot.lane.b32.xlu0 %v303, 65
        %v306 = vpop.permute.xlu0 %305
        %309 = vrot.lane.b32.xlu0 %v302, 65
        %v310 = vpop.permute.xlu0 %309
        %vm311 = vcmask 531456
        %v312 = vsel %vm311, %v310, %v306
        %v315 = vsel %vm311, %v306, %v310
        %316 = vrot.lane.b32.xlu0 %v303, 1
        %v317 = vpop.permute.xlu0 %316
        %319 = vrot.lane.b32.xlu0 %v302, 1
        %v320 = vpop.permute.xlu0 %319
        %vm321 = vcmask 7168
        %v322 = vsel %vm321, %v320, %v317
        %v325 = vsel %vm321, %v317, %v320
        %326 = vrot.lane.b32.xlu0 %v303, 64
        %v327 = vpop.permute.xlu0 %326
        %329 = vrot.lane.b32.xlu0 %v302, 64
        %v330 = vpop.permute.xlu0 %329
        %vm331 = vcmask 523264
        %v332 = vsel %vm331, %v330, %v327
        %v335 = vsel %vm331, %v327, %v330
        %336 = vrot.lane.b32.xlu0 %v303, 63
        %v337 = vpop.permute.xlu0 %336
        %339 = vrot.lane.b32.xlu0 %v302, 63
        %v340 = vpop.permute.xlu0 %339
        %vm341 = vcmask 515072
        %v342 = vsel %vm341, %v340, %v337
        %v345 = vsel %vm341, %v337, %v340
        %346 = vrot.lane.b32.xlu0 %v302, 127
        %v347 = vpop.permute.xlu0 %346
        %348 = vrot.lane.b32.xlu0 %v303, 127
        %v349 = vpop.permute.xlu0 %348
        %vm350 = vcmask 1039360
        %v351 = vsel %vm350, %v347, %v349
        %v355 = vsel %vm350, %v349, %v347
        %v356 = vpack.c.bf16 %v325, %v315
        %v357 = vpack.c.bf16 %v322, %v312
        %v358 = vpack.c.bf16 %v335, %v312
        %v359 = vpack.c.bf16 %v332, %v315
        %v360 = vpack.c.bf16 %v332, %v302
        %v361 = vpack.c.bf16 %v335, %v303
        %v362 = vpack.c.bf16 %v351, %v345
        %v363 = vpack.c.bf16 %v355, %v342
        %v364 = vpack.c.bf16 %v342, %v342
        %v365 = vpack.c.bf16 %v345, %v345
        %v366 = vld [vmem:[%s3] sm:$0xff]
        %v367 = vld [vmem:[%s3 + $0x8] sm:$0xff]
        %v368 = vld [vmem:[%s3 + $0x10] sm:$0xff]
        %v369 = vld [vmem:[%s3 + $0x18] sm:$0xff]
        %v370 = vld [vmem:[%s3 + $0x20] sm:$0xff]
        %v371 = vld [vmem:[%s3 + $0x28] sm:$0xff]
        %v372 = vld [vmem:[%s3 + $0x30] sm:$0xff]
        %v373 = vld [vmem:[%s3 + $0x38] sm:$0xff]
        %v374 = vld [vmem:[%s3 + $0x40] sm:$0xff]
        %v384 = vunpack.c.l.b16 %v366
        %v385 = vunpack.c.h.b16 %v366
        %v386 = vunpack.c.l.b16 %v367
        %v387 = vunpack.c.h.b16 %v367
        %v388 = vunpack.c.l.b16 %v368
        %v389 = vunpack.c.h.b16 %v368
        %v390 = vunpack.c.l.b16 %v369
        %v391 = vunpack.c.h.b16 %v369
        %v392 = vunpack.c.l.b16 %v370
        %v393 = vunpack.c.h.b16 %v370
        %v394 = vunpack.c.l.b16 %v371
        %v395 = vunpack.c.h.b16 %v371
        %v396 = vunpack.c.l.b16 %v372
        %v397 = vunpack.c.h.b16 %v372
        %v398 = vunpack.c.l.b16 %v373
        %v399 = vunpack.c.h.b16 %v373
        %v400 = vunpack.c.l.b16 %v374
        %v401 = vunpack.c.h.b16 %v374
        %v402 = vpack.c.b16 %v386, %v384
        %v403 = vpack.c.b16 %v387, %v385
        %v404 = vpack.c.b16 %v390, %v388
        %v405 = vpack.c.b16 %v391, %v389
        %v406 = vpack.c.b16 %v394, %v392
        %v407 = vpack.c.b16 %v395, %v393
        %v408 = vpack.c.b16 %v398, %v396
        %v409 = vpack.c.b16 %v399, %v397
        %v410 = vpack.c.b16 %v400, %v400
        %v411 = vpack.c.b16 %v401, %v401
        %v422 = vmul.bf16 %v356, %v402
        %v423 = vmul.bf16 %v357, %v403
        %v424 = vmul.bf16 %v358, %v404
        %v425 = vmul.bf16 %v359, %v405
        %v426 = vmul.bf16 %v360, %v406
        %v427 = vmul.bf16 %v361, %v407
        %v428 = vmul.bf16 %v362, %v408
        %v429 = vmul.bf16 %v363, %v409
        %v430 = vmul.bf16 %v364, %v410
        %v431 = vmul.bf16 %v365, %v411
        %v432 = vld [vmem:[%s4] sm:$0xf]
        %v433 = vld [vmem:[%s5] sm:$0xff]
        %435 = vset.pattern.permute.xlu0 0
        %436 = vperm.xlu0 %435, %v433
        %v437 = vpop.permute.xlu0 %436
        %vm439 = vcmask 588800
        %v441 = vsel %vm439, %v432, 0
        %vm443 = vcmask 1043456
        %v445 = vsel %vm443, %v430, 0
        %v448 = vsel %vm443, %v431, 0
        %450 = vmatprep.subr.bf16.mxu0 %v423
        %451 = vmatpush1.bf16.msra.mxu0 %v422
        %452 = vmatprep.subr.bf16.mxu0 %v425
        %453 = vmatpush1.bf16.msra.mxu0 %v424
        %454 = vmatprep.subr.bf16.mxu0 %v427
        %455 = vmatpush1.bf16.msra.mxu0 %v426
        %456 = vmatprep.subr.bf16.mxu0 %v429
        %457 = vmatpush1.bf16.msra.mxu0 %v428
        %458 = vmatprep.subr.bf16.mxu0 %v448
        %459 = vmatpush1.bf16.msra.mxu0 %v445
        %460 = vmatprep.subr.bf16.mxu0 0
        %461 = vmatpush1.bf16.msra.mxu0 0
        %462 = vmatprep.subr.bf16.mxu0 0
        %463 = vmatpush1.bf16.msra.mxu0 0
        %464 = vmatprep.subr.bf16.mxu0 0
        %465 = vmatpush1.bf16.msra.mxu0 0
        %466 = vmatprep.subr.bf16.mxu0 0
        %467 = vmatpush1.bf16.msra.mxu0 0
        %468 = vmatprep.subr.bf16.mxu0 0
        %469 = vmatpush1.bf16.msra.mxu0 0
        %470 = vmatprep.subr.bf16.mxu0 0
        %471 = vmatpush1.bf16.msra.mxu0 0
        %472 = vmatprep.subr.bf16.mxu0 0
        %473 = vmatpush1.bf16.msra.mxu0 0
        %474 = vmatprep.subr.bf16.mxu0 0
        %475 = vmatpush1.bf16.msra.mxu0 0
        %476 = vmatprep.subr.bf16.mxu0 0
        %477 = vmatpush1.bf16.msra.mxu0 0
        %478 = vmatprep.subr.bf16.mxu0 0
        %479 = vmatpush1.bf16.msra.mxu0 0
        %480 = vmatprep.subr.bf16.mxu0 0
        %481 = vmatpush1.bf16.msra.mxu0 0
        %482 = vmatprep.mubr.bf16.mxu0 0
        %483 = vmatmul.mubr.bf16.gmra.mrb[0].mxu0 %v441
        %v484 = vpop.f32.mrb[0].mxu0
        %v485 = vadd.f32 %v437, %v484
        %v486 = vpop.f32.mrb[0].mxu0
        %v487 = vadd.f32 %v437, %v486
        %v488 = vpop.f32.mrb[0].mxu0
        %v489 = vpop.f32.mrb[0].mxu0
        %490 = vdwg.mxu0
        %v491 = vmax.f32 %v485, 0.0
        %v492 = vmax.f32 %v487, 0.0
        %494 = vrot.lane.b32.xlu0 %v492, 65
        %v495 = vpop.permute.xlu0 %494
        %498 = vrot.lane.b32.xlu0 %v491, 65
        %v499 = vpop.permute.xlu0 %498
        %v500 = vsel %vm311, %v499, %v495
        %v503 = vsel %vm311, %v495, %v499
        %504 = vrot.lane.b32.xlu0 %v492, 1
        %v505 = vpop.permute.xlu0 %504
        %507 = vrot.lane.b32.xlu0 %v491, 1
        %v508 = vpop.permute.xlu0 %507
        %v509 = vsel %vm321, %v508, %v505
        %v512 = vsel %vm321, %v505, %v508
        %513 = vrot.lane.b32.xlu0 %v492, 64
        %v514 = vpop.permute.xlu0 %513
        %516 = vrot.lane.b32.xlu0 %v491, 64
        %v517 = vpop.permute.xlu0 %516
        %v518 = vsel %vm331, %v517, %v514
        %v521 = vsel %vm331, %v514, %v517
        %522 = vrot.lane.b32.xlu0 %v492, 63
        %v523 = vpop.permute.xlu0 %522
        %525 = vrot.lane.b32.xlu0 %v491, 63
        %v526 = vpop.permute.xlu0 %525
        %v527 = vsel %vm341, %v526, %v523
        %v530 = vsel %vm341, %v523, %v526
        %531 = vrot.lane.b32.xlu0 %v491, 127
        %v532 = vpop.permute.xlu0 %531
        %533 = vrot.lane.b32.xlu0 %v492, 127
        %v534 = vpop.permute.xlu0 %533
        %v535 = vsel %vm350, %v532, %v534
        %v539 = vsel %vm350, %v534, %v532
        %v540 = vpack.c.bf16 %v512, %v503
        %v541 = vpack.c.bf16 %v509, %v500
        %v542 = vpack.c.bf16 %v521, %v500
        %v543 = vpack.c.bf16 %v518, %v503
        %v544 = vpack.c.bf16 %v518, %v491
        %v545 = vpack.c.bf16 %v521, %v492
        %v546 = vpack.c.bf16 %v535, %v530
        %v547 = vpack.c.bf16 %v539, %v527
        %v548 = vpack.c.bf16 %v527, %v527
        %v549 = vpack.c.bf16 %v530, %v530
        %v550 = vmul.bf16 %v540, %v402
        %v551 = vmul.bf16 %v541, %v403
        %v552 = vmul.bf16 %v542, %v404
        %v553 = vmul.bf16 %v543, %v405
        %v554 = vmul.bf16 %v544, %v406
        %v555 = vmul.bf16 %v545, %v407
        %v556 = vmul.bf16 %v546, %v408
        %v557 = vmul.bf16 %v547, %v409
        %v558 = vmul.bf16 %v548, %v410
        %v559 = vmul.bf16 %v549, %v411
        %s560 = scalar_lea.vmem %s4, 4
        %v561 = vld [vmem:[%s560] sm:$0xf]
        %s562 = scalar_lea.vmem %s5, 8
        %v563 = vld [vmem:[%s562] sm:$0xff]
        %565 = vset.pattern.permute.xlu0 0
        %566 = vperm.xlu0 %565, %v563
        %v567 = vpop.permute.xlu0 %566
        %v570 = vsel %vm439, %v561, 0
        %v573 = vsel %vm443, %v558, 0
        %v576 = vsel %vm443, %v559, 0
        %578 = vmatprep.subr.bf16.mxu0 %v551
        %579 = vmatpush1.bf16.msra.mxu0 %v550
        %580 = vmatprep.subr.bf16.mxu0 %v553
        %581 = vmatpush1.bf16.msra.mxu0 %v552
        %582 = vmatprep.subr.bf16.mxu0 %v555
        %583 = vmatpush1.bf16.msra.mxu0 %v554
        %584 = vmatprep.subr.bf16.mxu0 %v557
        %585 = vmatpush1.bf16.msra.mxu0 %v556
        %586 = vmatprep.subr.bf16.mxu0 %v576
        %587 = vmatpush1.bf16.msra.mxu0 %v573
        %588 = vmatprep.subr.bf16.mxu0 0
        %589 = vmatpush1.bf16.msra.mxu0 0
        %590 = vmatprep.subr.bf16.mxu0 0
        %591 = vmatpush1.bf16.msra.mxu0 0
        %592 = vmatprep.subr.bf16.mxu0 0
        %593 = vmatpush1.bf16.msra.mxu0 0
        %594 = vmatprep.subr.bf16.mxu0 0
        %595 = vmatpush1.bf16.msra.mxu0 0
        %596 = vmatprep.subr.bf16.mxu0 0
        %597 = vmatpush1.bf16.msra.mxu0 0
        %598 = vmatprep.subr.bf16.mxu0 0
        %599 = vmatpush1.bf16.msra.mxu0 0
        %600 = vmatprep.subr.bf16.mxu0 0
        %601 = vmatpush1.bf16.msra.mxu0 0
        %602 = vmatprep.subr.bf16.mxu0 0
        %603 = vmatpush1.bf16.msra.mxu0 0
        %604 = vmatprep.subr.bf16.mxu0 0
        %605 = vmatpush1.bf16.msra.mxu0 0
        %606 = vmatprep.subr.bf16.mxu0 0
        %607 = vmatpush1.bf16.msra.mxu0 0
        %608 = vmatprep.subr.bf16.mxu0 0
        %609 = vmatpush1.bf16.msra.mxu0 0
        %610 = vmatprep.mubr.bf16.mxu0 0
        %611 = vmatmul.mubr.bf16.gmra.mrb[0].mxu0 %v570
        %v612 = vpop.f32.mrb[0].mxu0
        %v613 = vadd.f32 %v567, %v612
        %v614 = vpop.f32.mrb[0].mxu0
        %v615 = vadd.f32 %v567, %v614
        %v616 = vpop.f32.mrb[0].mxu0
        %v617 = vpop.f32.mrb[0].mxu0
        %618 = vdwg.mxu0
        %v619 = vmax.f32 %v613, 0.0
        %v620 = vmax.f32 %v615, 0.0
        %622 = vrot.lane.b32.xlu0 %v620, 65
        %v623 = vpop.permute.xlu0 %622
        %626 = vrot.lane.b32.xlu0 %v619, 65
        %v627 = vpop.permute.xlu0 %626
        %v628 = vsel %vm311, %v627, %v623
        %v631 = vsel %vm311, %v623, %v627
        %632 = vrot.lane.b32.xlu0 %v620, 1
        %v633 = vpop.permute.xlu0 %632
        %635 = vrot.lane.b32.xlu0 %v619, 1
        %v636 = vpop.permute.xlu0 %635
        %v637 = vsel %vm321, %v636, %v633
        %v640 = vsel %vm321, %v633, %v636
        %641 = vrot.lane.b32.xlu0 %v620, 64
        %v642 = vpop.permute.xlu0 %641
        %644 = vrot.lane.b32.xlu0 %v619, 64
        %v645 = vpop.permute.xlu0 %644
        %v646 = vsel %vm331, %v645, %v642
        %v649 = vsel %vm331, %v642, %v645
        %650 = vrot.lane.b32.xlu0 %v620, 63
        %v651 = vpop.permute.xlu0 %650
        %653 = vrot.lane.b32.xlu0 %v619, 63
        %v654 = vpop.permute.xlu0 %653
        %v655 = vsel %vm341, %v654, %v651
        %v658 = vsel %vm341, %v651, %v654
        %659 = vrot.lane.b32.xlu0 %v619, 127
        %v660 = vpop.permute.xlu0 %659
        %661 = vrot.lane.b32.xlu0 %v620, 127
        %v662 = vpop.permute.xlu0 %661
        %v663 = vsel %vm350, %v660, %v662
        %v667 = vsel %vm350, %v662, %v660
        %v668 = vpack.c.bf16 %v640, %v631
        %v669 = vpack.c.bf16 %v637, %v628
        %v670 = vpack.c.bf16 %v649, %v628
        %v671 = vpack.c.bf16 %v646, %v631
        %v672 = vpack.c.bf16 %v646, %v619
        %v673 = vpack.c.bf16 %v649, %v620
        %v674 = vpack.c.bf16 %v663, %v658
        %v675 = vpack.c.bf16 %v667, %v655
        %v676 = vpack.c.bf16 %v655, %v655
        %v677 = vpack.c.bf16 %v658, %v658
        %v678 = vmul.bf16 %v668, %v402
        %v679 = vmul.bf16 %v669, %v403
        %v680 = vmul.bf16 %v670, %v404
        %v681 = vmul.bf16 %v671, %v405
        %v682 = vmul.bf16 %v672, %v406
        %v683 = vmul.bf16 %v673, %v407
        %v684 = vmul.bf16 %v674, %v408
        %v685 = vmul.bf16 %v675, %v409
        %v686 = vmul.bf16 %v676, %v410
        %v687 = vmul.bf16 %v677, %v411
        %s688 = scalar_lea.vmem %s4, 8
        %v689 = vld [vmem:[%s688] sm:$0xf]
        %s690 = scalar_lea.vmem %s5, 16
        %v691 = vld [vmem:[%s690] sm:$0xff]
        %693 = vset.pattern.permute.xlu0 0
        %694 = vperm.xlu0 %693, %v691
        %v695 = vpop.permute.xlu0 %694
        %v698 = vsel %vm439, %v689, 0
        %v701 = vsel %vm443, %v686, 0
        %v704 = vsel %vm443, %v687, 0
        %706 = vmatprep.subr.bf16.mxu0 %v679
        %707 = vmatpush1.bf16.msra.mxu0 %v678
        %708 = vmatprep.subr.bf16.mxu0 %v681
        %709 = vmatpush1.bf16.msra.mxu0 %v680
        %710 = vmatprep.subr.bf16.mxu0 %v683
        %711 = vmatpush1.bf16.msra.mxu0 %v682
        %712 = vmatprep.subr.bf16.mxu0 %v685
        %713 = vmatpush1.bf16.msra.mxu0 %v684
        %714 = vmatprep.subr.bf16.mxu0 %v704
        %715 = vmatpush1.bf16.msra.mxu0 %v701
        %716 = vmatprep.subr.bf16.mxu0 0
        %717 = vmatpush1.bf16.msra.mxu0 0
        %718 = vmatprep.subr.bf16.mxu0 0
        %719 = vmatpush1.bf16.msra.mxu0 0
        %720 = vmatprep.subr.bf16.mxu0 0
        %721 = vmatpush1.bf16.msra.mxu0 0
        %722 = vmatprep.subr.bf16.mxu0 0
        %723 = vmatpush1.bf16.msra.mxu0 0
        %724 = vmatprep.subr.bf16.mxu0 0
        %725 = vmatpush1.bf16.msra.mxu0 0
        %726 = vmatprep.subr.bf16.mxu0 0
        %727 = vmatpush1.bf16.msra.mxu0 0
        %728 = vmatprep.subr.bf16.mxu0 0
        %729 = vmatpush1.bf16.msra.mxu0 0
        %730 = vmatprep.subr.bf16.mxu0 0
        %731 = vmatpush1.bf16.msra.mxu0 0
        %732 = vmatprep.subr.bf16.mxu0 0
        %733 = vmatpush1.bf16.msra.mxu0 0
        %734 = vmatprep.subr.bf16.mxu0 0
        %735 = vmatpush1.bf16.msra.mxu0 0
        %736 = vmatprep.subr.bf16.mxu0 0
        %737 = vmatpush1.bf16.msra.mxu0 0
        %738 = vmatprep.mubr.bf16.mxu0 0
        %739 = vmatmul.mubr.bf16.gmra.mrb[0].mxu0 %v698
        %v740 = vpop.f32.mrb[0].mxu0
        %v741 = vadd.f32 %v695, %v740
        %v742 = vpop.f32.mrb[0].mxu0
        %v743 = vadd.f32 %v695, %v742
        %v744 = vpop.f32.mrb[0].mxu0
        %v745 = vpop.f32.mrb[0].mxu0
        %746 = vdwg.mxu0
        %v747 = vmax.f32 %v741, 0.0
        %v748 = vmax.f32 %v743, 0.0
        %v749 = vadd.f32 %v747, %v491
        %v750 = vadd.f32 %v748, %v492
        %752 = vrot.lane.b32.xlu0 %v750, 65
        %v753 = vpop.permute.xlu0 %752
        %756 = vrot.lane.b32.xlu0 %v749, 65
        %v757 = vpop.permute.xlu0 %756
        %v758 = vsel %vm311, %v757, %v753
        %v761 = vsel %vm311, %v753, %v757
        %762 = vrot.lane.b32.xlu0 %v750, 1
        %v763 = vpop.permute.xlu0 %762
        %765 = vrot.lane.b32.xlu0 %v749, 1
        %v766 = vpop.permute.xlu0 %765
        %v767 = vsel %vm321, %v766, %v763
        %v770 = vsel %vm321, %v763, %v766
        %771 = vrot.lane.b32.xlu0 %v750, 64
        %v772 = vpop.permute.xlu0 %771
        %774 = vrot.lane.b32.xlu0 %v749, 64
        %v775 = vpop.permute.xlu0 %774
        %v776 = vsel %vm331, %v775, %v772
        %v779 = vsel %vm331, %v772, %v775
        %780 = vrot.lane.b32.xlu0 %v750, 63
        %v781 = vpop.permute.xlu0 %780
        %783 = vrot.lane.b32.xlu0 %v749, 63
        %v784 = vpop.permute.xlu0 %783
        %v785 = vsel %vm341, %v784, %v781
        %v788 = vsel %vm341, %v781, %v784
        %789 = vrot.lane.b32.xlu0 %v749, 127
        %v790 = vpop.permute.xlu0 %789
        %791 = vrot.lane.b32.xlu0 %v750, 127
        %v792 = vpop.permute.xlu0 %791
        %v793 = vsel %vm350, %v790, %v792
        %v797 = vsel %vm350, %v792, %v790
        %v798 = vpack.c.bf16 %v770, %v761
        %v799 = vpack.c.bf16 %v767, %v758
        %v800 = vpack.c.bf16 %v779, %v758
        %v801 = vpack.c.bf16 %v776, %v761
        %v802 = vpack.c.bf16 %v776, %v749
        %v803 = vpack.c.bf16 %v779, %v750
        %v804 = vpack.c.bf16 %v793, %v788
        %v805 = vpack.c.bf16 %v797, %v785
        %v806 = vpack.c.bf16 %v785, %v785
        %v807 = vpack.c.bf16 %v788, %v788
        %v808 = vmul.bf16 %v798, %v402
        %v809 = vmul.bf16 %v799, %v403
        %v810 = vmul.bf16 %v800, %v404
        %v811 = vmul.bf16 %v801, %v405
        %v812 = vmul.bf16 %v802, %v406
        %v813 = vmul.bf16 %v803, %v407
        %v814 = vmul.bf16 %v804, %v408
        %v815 = vmul.bf16 %v805, %v409
        %v816 = vmul.bf16 %v806, %v410
        %v817 = vmul.bf16 %v807, %v411
        %s818 = scalar_lea.vmem %s4, 12
        %v819 = vld [vmem:[%s818] sm:$0xf]
        %s820 = scalar_lea.vmem %s5, 24
        %v821 = vld [vmem:[%s820] sm:$0xff]
        %823 = vset.pattern.permute.xlu0 0
        %824 = vperm.xlu0 %823, %v821
        %v825 = vpop.permute.xlu0 %824
        %v828 = vsel %vm439, %v819, 0
        %v831 = vsel %vm443, %v816, 0
        %v834 = vsel %vm443, %v817, 0
        %836 = vmatprep.subr.bf16.mxu0 %v809
        %837 = vmatpush1.bf16.msra.mxu0 %v808
        %838 = vmatprep.subr.bf16.mxu0 %v811
        %839 = vmatpush1.bf16.msra.mxu0 %v810
        %840 = vmatprep.subr.bf16.mxu0 %v813
        %841 = vmatpush1.bf16.msra.mxu0 %v812
        %842 = vmatprep.subr.bf16.mxu0 %v815
        %843 = vmatpush1.bf16.msra.mxu0 %v814
        %844 = vmatprep.subr.bf16.mxu0 %v834
        %845 = vmatpush1.bf16.msra.mxu0 %v831
        %846 = vmatprep.subr.bf16.mxu0 0
        %847 = vmatpush1.bf16.msra.mxu0 0
        %848 = vmatprep.subr.bf16.mxu0 0
        %849 = vmatpush1.bf16.msra.mxu0 0
        %850 = vmatprep.subr.bf16.mxu0 0
        %851 = vmatpush1.bf16.msra.mxu0 0
        %852 = vmatprep.subr.bf16.mxu0 0
        %853 = vmatpush1.bf16.msra.mxu0 0
        %854 = vmatprep.subr.bf16.mxu0 0
        %855 = vmatpush1.bf16.msra.mxu0 0
        %856 = vmatprep.subr.bf16.mxu0 0
        %857 = vmatpush1.bf16.msra.mxu0 0
        %858 = vmatprep.subr.bf16.mxu0 0
        %859 = vmatpush1.bf16.msra.mxu0 0
        %860 = vmatprep.subr.bf16.mxu0 0
        %861 = vmatpush1.bf16.msra.mxu0 0
        %862 = vmatprep.subr.bf16.mxu0 0
        %863 = vmatpush1.bf16.msra.mxu0 0
        %864 = vmatprep.subr.bf16.mxu0 0
        %865 = vmatpush1.bf16.msra.mxu0 0
        %866 = vmatprep.subr.bf16.mxu0 0
        %867 = vmatpush1.bf16.msra.mxu0 0
        %868 = vmatprep.mubr.bf16.mxu0 0
        %869 = vmatmul.mubr.bf16.gmra.mrb[0].mxu0 %v828
        %v870 = vpop.f32.mrb[0].mxu0
        %v871 = vadd.f32 %v825, %v870
        %v872 = vpop.f32.mrb[0].mxu0
        %v873 = vadd.f32 %v825, %v872
        %v874 = vpop.f32.mrb[0].mxu0
        %v875 = vpop.f32.mrb[0].mxu0
        %876 = vdwg.mxu0
        %v877 = vld [vmem:[%s286] sm:$0xff]
        %v878 = vld [vmem:[%s286 + $0x8] sm:$0xff]
        %v879 = vld [vmem:[%s286 + $0x10] sm:$0xff]
        %v880 = vld [vmem:[%s286 + $0x18] sm:$0xff]
        %v881 = vld [vmem:[%s286 + $0x20] sm:$0xff]
        %v882 = vld [vmem:[%s286 + $0x28] sm:$0xff]
        %v883 = vld [vmem:[%s286 + $0x30] sm:$0xff]
        %v884 = vld [vmem:[%s286 + $0x38] sm:$0xff]
        %v885 = vld [vmem:[%s286 + $0x40] sm:$0xff]
        %v886 = vld [vmem:[%s286 + $0x48] sm:$0xff]
        %v887 = vld [vmem:[%s286 + $0x50] sm:$0xff]
        %v888 = vld [vmem:[%s286 + $0x58] sm:$0xff]
        %v889 = vld [vmem:[%s286 + $0x60] sm:$0xff]
        %v890 = vld [vmem:[%s286 + $0x68] sm:$0xff]
        %v891 = vld [vmem:[%s286 + $0x70] sm:$0xff]
        %v892 = vld [vmem:[%s286 + $0x78] sm:$0xff]
        %v893 = vld [vmem:[%s286 + $0x80] sm:$0xff]
        %v894 = vld [vmem:[%s286 + $0x88] sm:$0xff]
        %v895 = vld [vmem:[%s286 + $0x90] sm:$0xff]
        %v896 = vld [vmem:[%s286 + $0x98] sm:$0xff]
        %v897 = vld [vmem:[%s286 + $0xa0] sm:$0xff]
        %v898 = vld [vmem:[%s286 + $0xa8] sm:$0xff]
        %v899 = vld [vmem:[%s286 + $0xb0] sm:$0xff]
        %v900 = vld [vmem:[%s286 + $0xb8] sm:$0xff]
        %v901 = vld [vmem:[%s286 + $0xc0] sm:$0xff]
        %v902 = vld [vmem:[%s286 + $0xc8] sm:$0xff]
        %v903 = vld [vmem:[%s286 + $0xd0] sm:$0xff]
        %v904 = vld [vmem:[%s286 + $0xd8] sm:$0xff]
        %v905 = vld [vmem:[%s286 + $0xe0] sm:$0xff]
        %v906 = vld [vmem:[%s286 + $0xe8] sm:$0xff]
        %v907 = vld [vmem:[%s286 + $0xf0] sm:$0xff]
        %v908 = vld [vmem:[%s286 + $0xf8] sm:$0xff]
        %v909 = vlaneseq
        %v910 = vand.u32 %v909, 127
        %v911 = vadd.s32 %v910, 128
        %912 = vset.pattern.permute.xlu0 0
        %913 = vperm.xlu0 %912, %v877
        %v914 = vpop.permute.xlu0 %913
        %915 = vset.pattern.permute.xlu0 0
        %916 = vperm.xlu0 %915, %v878
        %v917 = vpop.permute.xlu0 %916
        %918 = vset.pattern.permute.xlu0 0
        %919 = vperm.xlu0 %918, %v879
        %v920 = vpop.permute.xlu0 %919
        %921 = vset.pattern.permute.xlu0 0
        %922 = vperm.xlu0 %921, %v880
        %v923 = vpop.permute.xlu0 %922
        %924 = vset.pattern.permute.xlu0 0
        %925 = vperm.xlu0 %924, %v881
        %v926 = vpop.permute.xlu0 %925
        %927 = vset.pattern.permute.xlu0 0
        %928 = vperm.xlu0 %927, %v882
        %v929 = vpop.permute.xlu0 %928
        %930 = vset.pattern.permute.xlu0 0
        %931 = vperm.xlu0 %930, %v883
        %v932 = vpop.permute.xlu0 %931
        %933 = vset.pattern.permute.xlu0 0
        %934 = vperm.xlu0 %933, %v884
        %v935 = vpop.permute.xlu0 %934
        %936 = vset.pattern.permute.xlu0 0
        %937 = vperm.xlu0 %936, %v885
        %v938 = vpop.permute.xlu0 %937
        %939 = vset.pattern.permute.xlu0 0
        %940 = vperm.xlu0 %939, %v886
        %v941 = vpop.permute.xlu0 %940
        %942 = vset.pattern.permute.xlu0 0
        %943 = vperm.xlu0 %942, %v887
        %v944 = vpop.permute.xlu0 %943
        %945 = vset.pattern.permute.xlu0 0
        %946 = vperm.xlu0 %945, %v888
        %v947 = vpop.permute.xlu0 %946
        %948 = vset.pattern.permute.xlu0 0
        %949 = vperm.xlu0 %948, %v889
        %v950 = vpop.permute.xlu0 %949
        %951 = vset.pattern.permute.xlu0 0
        %952 = vperm.xlu0 %951, %v890
        %v953 = vpop.permute.xlu0 %952
        %954 = vset.pattern.permute.xlu0 0
        %955 = vperm.xlu0 %954, %v891
        %v956 = vpop.permute.xlu0 %955
        %957 = vset.pattern.permute.xlu0 0
        %958 = vperm.xlu0 %957, %v892
        %v959 = vpop.permute.xlu0 %958
        %960 = vset.pattern.permute.xlu0 0
        %961 = vperm.xlu0 %960, %v893
        %v962 = vpop.permute.xlu0 %961
        %963 = vset.pattern.permute.xlu0 0
        %964 = vperm.xlu0 %963, %v894
        %v965 = vpop.permute.xlu0 %964
        %966 = vset.pattern.permute.xlu0 0
        %967 = vperm.xlu0 %966, %v895
        %v968 = vpop.permute.xlu0 %967
        %969 = vset.pattern.permute.xlu0 0
        %970 = vperm.xlu0 %969, %v896
        %v971 = vpop.permute.xlu0 %970
        %972 = vset.pattern.permute.xlu0 0
        %973 = vperm.xlu0 %972, %v897
        %v974 = vpop.permute.xlu0 %973
        %975 = vset.pattern.permute.xlu0 0
        %976 = vperm.xlu0 %975, %v898
        %v977 = vpop.permute.xlu0 %976
        %978 = vset.pattern.permute.xlu0 0
        %979 = vperm.xlu0 %978, %v899
        %v980 = vpop.permute.xlu0 %979
        %981 = vset.pattern.permute.xlu0 0
        %982 = vperm.xlu0 %981, %v900
        %v983 = vpop.permute.xlu0 %982
        %984 = vset.pattern.permute.xlu0 0
        %985 = vperm.xlu0 %984, %v901
        %v986 = vpop.permute.xlu0 %985
        %987 = vset.pattern.permute.xlu0 0
        %988 = vperm.xlu0 %987, %v902
        %v989 = vpop.permute.xlu0 %988
        %990 = vset.pattern.permute.xlu0 0
        %991 = vperm.xlu0 %990, %v903
        %v992 = vpop.permute.xlu0 %991
        %993 = vset.pattern.permute.xlu0 0
        %994 = vperm.xlu0 %993, %v904
        %v995 = vpop.permute.xlu0 %994
        %996 = vset.pattern.permute.xlu0 0
        %997 = vperm.xlu0 %996, %v905
        %v998 = vpop.permute.xlu0 %997
        %999 = vset.pattern.permute.xlu0 0
        %1000 = vperm.xlu0 %999, %v906
        %v1001 = vpop.permute.xlu0 %1000
        %1002 = vset.pattern.permute.xlu0 0
        %1003 = vperm.xlu0 %1002, %v907
        %v1004 = vpop.permute.xlu0 %1003
        %1005 = vset.pattern.permute.xlu0 0
        %1006 = vperm.xlu0 %1005, %v908
        %v1007 = vpop.permute.xlu0 %1006
        %vm1008 = vcmp.eq.s32.totalorder %v910, %v914
        %vm1009 = vcmp.eq.s32.totalorder %v911, %v914
        %vm1010 = vcmp.eq.s32.totalorder %v910, %v917
        %vm1011 = vcmp.eq.s32.totalorder %v911, %v917
        %vm1012 = vcmp.eq.s32.totalorder %v910, %v920
        %vm1013 = vcmp.eq.s32.totalorder %v911, %v920
        %vm1014 = vcmp.eq.s32.totalorder %v910, %v923
        %vm1015 = vcmp.eq.s32.totalorder %v911, %v923
        %vm1016 = vcmp.eq.s32.totalorder %v910, %v926
        %vm1017 = vcmp.eq.s32.totalorder %v911, %v926
        %vm1018 = vcmp.eq.s32.totalorder %v910, %v929
        %vm1019 = vcmp.eq.s32.totalorder %v911, %v929
        %vm1020 = vcmp.eq.s32.totalorder %v910, %v932
        %vm1021 = vcmp.eq.s32.totalorder %v911, %v932
        %vm1022 = vcmp.eq.s32.totalorder %v910, %v935
        %vm1023 = vcmp.eq.s32.totalorder %v911, %v935
        %vm1024 = vcmp.eq.s32.totalorder %v910, %v938
        %vm1025 = vcmp.eq.s32.totalorder %v911, %v938
        %vm1026 = vcmp.eq.s32.totalorder %v910, %v941
        %vm1027 = vcmp.eq.s32.totalorder %v911, %v941
        %vm1028 = vcmp.eq.s32.totalorder %v910, %v944
        %vm1029 = vcmp.eq.s32.totalorder %v911, %v944
        %vm1030 = vcmp.eq.s32.totalorder %v910, %v947
        %vm1031 = vcmp.eq.s32.totalorder %v911, %v947
        %vm1032 = vcmp.eq.s32.totalorder %v910, %v950
        %vm1033 = vcmp.eq.s32.totalorder %v911, %v950
        %vm1034 = vcmp.eq.s32.totalorder %v910, %v953
        %vm1035 = vcmp.eq.s32.totalorder %v911, %v953
        %vm1036 = vcmp.eq.s32.totalorder %v910, %v956
        %vm1037 = vcmp.eq.s32.totalorder %v911, %v956
        %vm1038 = vcmp.eq.s32.totalorder %v910, %v959
        %vm1039 = vcmp.eq.s32.totalorder %v911, %v959
        %vm1040 = vcmp.eq.s32.totalorder %v910, %v962
        %vm1041 = vcmp.eq.s32.totalorder %v911, %v962
        %vm1042 = vcmp.eq.s32.totalorder %v910, %v965
        %vm1043 = vcmp.eq.s32.totalorder %v911, %v965
        %vm1044 = vcmp.eq.s32.totalorder %v910, %v968
        %vm1045 = vcmp.eq.s32.totalorder %v911, %v968
        %vm1046 = vcmp.eq.s32.totalorder %v910, %v971
        %vm1047 = vcmp.eq.s32.totalorder %v911, %v971
        %vm1048 = vcmp.eq.s32.totalorder %v910, %v974
        %vm1049 = vcmp.eq.s32.totalorder %v911, %v974
        %vm1050 = vcmp.eq.s32.totalorder %v910, %v977
        %vm1051 = vcmp.eq.s32.totalorder %v911, %v977
        %vm1052 = vcmp.eq.s32.totalorder %v910, %v980
        %vm1053 = vcmp.eq.s32.totalorder %v911, %v980
        %vm1054 = vcmp.eq.s32.totalorder %v910, %v983
        %vm1055 = vcmp.eq.s32.totalorder %v911, %v983
        %vm1056 = vcmp.eq.s32.totalorder %v910, %v986
        %vm1057 = vcmp.eq.s32.totalorder %v911, %v986
        %vm1058 = vcmp.eq.s32.totalorder %v910, %v989
        %vm1059 = vcmp.eq.s32.totalorder %v911, %v989
        %vm1060 = vcmp.eq.s32.totalorder %v910, %v992
        %vm1061 = vcmp.eq.s32.totalorder %v911, %v992
        %vm1062 = vcmp.eq.s32.totalorder %v910, %v995
        %vm1063 = vcmp.eq.s32.totalorder %v911, %v995
        %vm1064 = vcmp.eq.s32.totalorder %v910, %v998
        %vm1065 = vcmp.eq.s32.totalorder %v911, %v998
        %vm1066 = vcmp.eq.s32.totalorder %v910, %v1001
        %vm1067 = vcmp.eq.s32.totalorder %v911, %v1001
        %vm1068 = vcmp.eq.s32.totalorder %v910, %v1004
        %vm1069 = vcmp.eq.s32.totalorder %v911, %v1004
        %vm1070 = vcmp.eq.s32.totalorder %v910, %v1007
        %vm1071 = vcmp.eq.s32.totalorder %v911, %v1007
        %v1072 = vsel %vm1008, 1, 0
        %v1073 = vsel %vm1009, 1, 0
        %v1074 = vsel %vm1010, 1, 0
        %v1075 = vsel %vm1011, 1, 0
        %v1076 = vsel %vm1012, 1, 0
        %v1077 = vsel %vm1013, 1, 0
        %v1078 = vsel %vm1014, 1, 0
        %v1079 = vsel %vm1015, 1, 0
        %v1080 = vsel %vm1016, 1, 0
        %v1081 = vsel %vm1017, 1, 0
        %v1082 = vsel %vm1018, 1, 0
        %v1083 = vsel %vm1019, 1, 0
        %v1084 = vsel %vm1020, 1, 0
        %v1085 = vsel %vm1021, 1, 0
        %v1086 = vsel %vm1022, 1, 0
        %v1087 = vsel %vm1023, 1, 0
        %v1088 = vsel %vm1024, 1, 0
        %v1089 = vsel %vm1025, 1, 0
        %v1090 = vsel %vm1026, 1, 0
        %v1091 = vsel %vm1027, 1, 0
        %v1092 = vsel %vm1028, 1, 0
        %v1093 = vsel %vm1029, 1, 0
        %v1094 = vsel %vm1030, 1, 0
        %v1095 = vsel %vm1031, 1, 0
        %v1096 = vsel %vm1032, 1, 0
        %v1097 = vsel %vm1033, 1, 0
        %v1098 = vsel %vm1034, 1, 0
        %v1099 = vsel %vm1035, 1, 0
        %v1100 = vsel %vm1036, 1, 0
        %v1101 = vsel %vm1037, 1, 0
        %v1102 = vsel %vm1038, 1, 0
        %v1103 = vsel %vm1039, 1, 0
        %v1104 = vsel %vm1040, 1, 0
        %v1105 = vsel %vm1041, 1, 0
        %v1106 = vsel %vm1042, 1, 0
        %v1107 = vsel %vm1043, 1, 0
        %v1108 = vsel %vm1044, 1, 0
        %v1109 = vsel %vm1045, 1, 0
        %v1110 = vsel %vm1046, 1, 0
        %v1111 = vsel %vm1047, 1, 0
        %v1112 = vsel %vm1048, 1, 0
        %v1113 = vsel %vm1049, 1, 0
        %v1114 = vsel %vm1050, 1, 0
        %v1115 = vsel %vm1051, 1, 0
        %v1116 = vsel %vm1052, 1, 0
        %v1117 = vsel %vm1053, 1, 0
        %v1118 = vsel %vm1054, 1, 0
        %v1119 = vsel %vm1055, 1, 0
        %v1120 = vsel %vm1056, 1, 0
        %v1121 = vsel %vm1057, 1, 0
        %v1122 = vsel %vm1058, 1, 0
        %v1123 = vsel %vm1059, 1, 0
        %v1124 = vsel %vm1060, 1, 0
        %v1125 = vsel %vm1061, 1, 0
        %v1126 = vsel %vm1062, 1, 0
        %v1127 = vsel %vm1063, 1, 0
        %v1128 = vsel %vm1064, 1, 0
        %v1129 = vsel %vm1065, 1, 0
        %v1130 = vsel %vm1066, 1, 0
        %v1131 = vsel %vm1067, 1, 0
        %v1132 = vsel %vm1068, 1, 0
        %v1133 = vsel %vm1069, 1, 0
        %v1134 = vsel %vm1070, 1, 0
        %v1135 = vsel %vm1071, 1, 0
        %v1136 = vcvt.s32.f32 %v1072
        %v1137 = vcvt.s32.f32 %v1073
        %v1138 = vcvt.s32.f32 %v1074
        %v1139 = vcvt.s32.f32 %v1075
        %v1140 = vcvt.s32.f32 %v1076
        %v1141 = vcvt.s32.f32 %v1077
        %v1142 = vcvt.s32.f32 %v1078
        %v1143 = vcvt.s32.f32 %v1079
        %v1144 = vcvt.s32.f32 %v1080
        %v1145 = vcvt.s32.f32 %v1081
        %v1146 = vcvt.s32.f32 %v1082
        %v1147 = vcvt.s32.f32 %v1083
        %v1148 = vcvt.s32.f32 %v1084
        %v1149 = vcvt.s32.f32 %v1085
        %v1150 = vcvt.s32.f32 %v1086
        %v1151 = vcvt.s32.f32 %v1087
        %v1152 = vcvt.s32.f32 %v1088
        %v1153 = vcvt.s32.f32 %v1089
        %v1154 = vcvt.s32.f32 %v1090
        %v1155 = vcvt.s32.f32 %v1091
        %v1156 = vcvt.s32.f32 %v1092
        %v1157 = vcvt.s32.f32 %v1093
        %v1158 = vcvt.s32.f32 %v1094
        %v1159 = vcvt.s32.f32 %v1095
        %v1160 = vcvt.s32.f32 %v1096
        %v1161 = vcvt.s32.f32 %v1097
        %v1162 = vcvt.s32.f32 %v1098
        %v1163 = vcvt.s32.f32 %v1099
        %v1164 = vcvt.s32.f32 %v1100
        %v1165 = vcvt.s32.f32 %v1101
        %v1166 = vcvt.s32.f32 %v1102
        %v1167 = vcvt.s32.f32 %v1103
        %v1168 = vcvt.s32.f32 %v1104
        %v1169 = vcvt.s32.f32 %v1105
        %v1170 = vcvt.s32.f32 %v1106
        %v1171 = vcvt.s32.f32 %v1107
        %v1172 = vcvt.s32.f32 %v1108
        %v1173 = vcvt.s32.f32 %v1109
        %v1174 = vcvt.s32.f32 %v1110
        %v1175 = vcvt.s32.f32 %v1111
        %v1176 = vcvt.s32.f32 %v1112
        %v1177 = vcvt.s32.f32 %v1113
        %v1178 = vcvt.s32.f32 %v1114
        %v1179 = vcvt.s32.f32 %v1115
        %v1180 = vcvt.s32.f32 %v1116
        %v1181 = vcvt.s32.f32 %v1117
        %v1182 = vcvt.s32.f32 %v1118
        %v1183 = vcvt.s32.f32 %v1119
        %v1184 = vcvt.s32.f32 %v1120
        %v1185 = vcvt.s32.f32 %v1121
        %v1186 = vcvt.s32.f32 %v1122
        %v1187 = vcvt.s32.f32 %v1123
        %v1188 = vcvt.s32.f32 %v1124
        %v1189 = vcvt.s32.f32 %v1125
        %v1190 = vcvt.s32.f32 %v1126
        %v1191 = vcvt.s32.f32 %v1127
        %v1192 = vcvt.s32.f32 %v1128
        %v1193 = vcvt.s32.f32 %v1129
        %v1194 = vcvt.s32.f32 %v1130
        %v1195 = vcvt.s32.f32 %v1131
        %v1196 = vcvt.s32.f32 %v1132
        %v1197 = vcvt.s32.f32 %v1133
        %v1198 = vcvt.s32.f32 %v1134
        %v1199 = vcvt.s32.f32 %v1135
        %v1200 = vpack.c.bf16 %v1138, %v1136
        %v1201 = vpack.c.bf16 %v1139, %v1137
        %v1202 = vpack.c.bf16 %v1142, %v1140
        %v1203 = vpack.c.bf16 %v1143, %v1141
        %v1204 = vpack.c.bf16 %v1146, %v1144
        %v1205 = vpack.c.bf16 %v1147, %v1145
        %v1206 = vpack.c.bf16 %v1150, %v1148
        %v1207 = vpack.c.bf16 %v1151, %v1149
        %v1208 = vpack.c.bf16 %v1154, %v1152
        %v1209 = vpack.c.bf16 %v1155, %v1153
        %v1210 = vpack.c.bf16 %v1158, %v1156
        %v1211 = vpack.c.bf16 %v1159, %v1157
        %v1212 = vpack.c.bf16 %v1162, %v1160
        %v1213 = vpack.c.bf16 %v1163, %v1161
        %v1214 = vpack.c.bf16 %v1166, %v1164
        %v1215 = vpack.c.bf16 %v1167, %v1165
        %v1216 = vpack.c.bf16 %v1170, %v1168
        %v1217 = vpack.c.bf16 %v1171, %v1169
        %v1218 = vpack.c.bf16 %v1174, %v1172
        %v1219 = vpack.c.bf16 %v1175, %v1173
        %v1220 = vpack.c.bf16 %v1178, %v1176
        %v1221 = vpack.c.bf16 %v1179, %v1177
        %v1222 = vpack.c.bf16 %v1182, %v1180
        %v1223 = vpack.c.bf16 %v1183, %v1181
        %v1224 = vpack.c.bf16 %v1186, %v1184
        %v1225 = vpack.c.bf16 %v1187, %v1185
        %v1226 = vpack.c.bf16 %v1190, %v1188
        %v1227 = vpack.c.bf16 %v1191, %v1189
        %v1228 = vpack.c.bf16 %v1194, %v1192
        %v1229 = vpack.c.bf16 %v1195, %v1193
        %v1230 = vpack.c.bf16 %v1198, %v1196
        %v1231 = vpack.c.bf16 %v1199, %v1197
        %v1232 = vpack.c.bf16 %v871, %v871
        %v1233 = vpack.c.bf16 %v873, %v873
        %1234 = vmatprep.subr.bf16.mxu0 %v1201
        %1235 = vmatpush1.bf16.msra.mxu0 %v1200
        %1236 = vmatprep.subr.bf16.mxu0 %v1203
        %1237 = vmatpush1.bf16.msra.mxu0 %v1202
        %1238 = vmatprep.subr.bf16.mxu0 %v1205
        %1239 = vmatpush1.bf16.msra.mxu0 %v1204
        %1240 = vmatprep.subr.bf16.mxu0 %v1207
        %1241 = vmatpush1.bf16.msra.mxu0 %v1206
        %1242 = vmatprep.subr.bf16.mxu0 %v1209
        %1243 = vmatpush1.bf16.msra.mxu0 %v1208
        %1244 = vmatprep.subr.bf16.mxu0 %v1211
        %1245 = vmatpush1.bf16.msra.mxu0 %v1210
        %1246 = vmatprep.subr.bf16.mxu0 %v1213
        %1247 = vmatpush1.bf16.msra.mxu0 %v1212
        %1248 = vmatprep.subr.bf16.mxu0 %v1215
        %1249 = vmatpush1.bf16.msra.mxu0 %v1214
        %1250 = vmatprep.subr.bf16.mxu0 %v1217
        %1251 = vmatpush1.bf16.msra.mxu0 %v1216
        %1252 = vmatprep.subr.bf16.mxu0 %v1219
        %1253 = vmatpush1.bf16.msra.mxu0 %v1218
        %1254 = vmatprep.subr.bf16.mxu0 %v1221
        %1255 = vmatpush1.bf16.msra.mxu0 %v1220
        %1256 = vmatprep.subr.bf16.mxu0 %v1223
        %1257 = vmatpush1.bf16.msra.mxu0 %v1222
        %1258 = vmatprep.subr.bf16.mxu0 %v1225
        %1259 = vmatpush1.bf16.msra.mxu0 %v1224
        %1260 = vmatprep.subr.bf16.mxu0 %v1227
        %1261 = vmatpush1.bf16.msra.mxu0 %v1226
        %1262 = vmatprep.subr.bf16.mxu0 %v1229
        %1263 = vmatpush1.bf16.msra.mxu0 %v1228
        %1264 = vmatprep.subr.bf16.mxu0 %v1231
        %1265 = vmatpush1.bf16.msra.mxu0 %v1230
        %1266 = vmatprep.mubr.bf16.mxu0 %v1233
        %1267 = vmatmul.mubr.bf16.gmra.mrb[0].mxu0 %v1232
        %v1268 = vpop.f32.mrb[0].mxu0
        %v1269 = vadd.f32 0.0, %v1268
        %v1270 = vpop.f32.mrb[0].mxu0
        %v1271 = vadd.f32 0.0, %v1270
        %v1272 = vpop.f32.mrb[0].mxu0
        %v1273 = vpop.f32.mrb[0].mxu0
        %1274 = vdwg.mxu0
        %1275 = vst [vmem:[%s272] sm:$0xff] %v1269
        %1276 = vst [vmem:[%s272 + $0x8] sm:$0xff] %v1271
        %s1277 = sand.u32 %s169, 1
        %s1278 = scalar_lea.sflag [#allocation3], %s1277
        %s1279 = sand.u32 %s169, 1
        %s1280 = smul.addr %s1279, 16
        %s1281 = scalar_lea.vmem [#allocation2], %s1280
        // Predicated region
        $region45: #{tpu_custom_call.1} parent=43 // pred_check
          %p1282 = pneg %p179
        $region46: #{tpu_custom_call.1} parent=43 // pred_check_branch
          %1284 = sbr.rel (%p1282) target = $region48
        $region47: #{tpu_custom_call.1} parent=43 // pred_region
          %s1286 = ssub.s32 256, 256
          %1287 = vsyncadd %s1278, %s1286
          %s1288 = smul.addr %s20, 2
          %s1289 = smul.addr %s1288, 128
          %s1290 = scalar_lea.hbm %s6, %s1289
          %s1292 = sshll.u32 %s1281, 4
          %s1293 = int_to_ptr.vmem [resolvable:$true] %s1292
          %1295 = dma.vmem_to_hbm [thread:$0]  %s1293, 256, %s1290, %s1278
        $region48: #{tpu_custom_call.1} parent=43 // pred_fallthru
          _
      $region44: #{tpu_custom_call.1} parent=5 // pred_fallthru
        _
      %p1296 = scmp.le.s32.totalorder 2, %s15
      // Predicated region
      $region49: #{tpu_custom_call.1} parent=5 // pred_check
        %p1297 = pneg %p1296
      $region50: #{tpu_custom_call.1} parent=5 // pred_check_branch
        %1299 = sbr.rel (%p1297) target = $region52
      $region51: #{tpu_custom_call.1} parent=5 // pred_region
        %s1300 = ssub.s32 %s15, 2
        // Predicated region
        $region53: #{tpu_custom_call.1} parent=51 // pred_check
          %p1301 = pneg %p185
        $region54: #{tpu_custom_call.1} parent=51 // pred_check_branch
          %1303 = sbr.rel (%p1301) target = $region56
        $region55: #{tpu_custom_call.1} parent=51 // pred_region
          %s1304 = sand.u32 %s170, 1
          %s1305 = scalar_lea.sflag [#allocation3], %s1304
          %s1306 = sand.u32 %s170, 1
          %s1307 = smul.addr %s1306, 16
          %s1308 = scalar_lea.vmem [#allocation2], %s1307
          %1309 = dma.done %s1305, 256
        $region56: #{tpu_custom_call.1} parent=51 // pred_fallthru
          _
      $region52: #{tpu_custom_call.1} parent=5 // pred_fallthru
        _
    $region6: #{tpu_custom_call.1} parent=1 // loop_footer
      %s19 = sadd.s32 1, %s15
    $region7: #{tpu_custom_call.1} parent=1 // loop_footer_branch
      %14 = sbr.rel target = $region3
    $region8: #{tpu_custom_call.1} parent=1 // loop_exit
      _
    %1310 = vsyncpa [#allocation3], 1
    %s1311 = scalar_lea.sflag [#allocation3], 1
    %1312 = vsyncpa %s1311, 1

</llo_original>
